<compile_context>
chip_gen: v5e
topology: v5e:2x2
jax: 0.10.0
libtpu: 0.0.40
codegen_flags: <defaults>
</compile_context>

<pallas_src>
import jax
import jax.numpy as jnp
from jax.experimental import pallas as pl
from jax.experimental.pallas import tpu as pltpu

SMEM = pltpu.MemorySpace.SMEM


# ----------------------------- kernels -----------------------------

def _add_norm_kernel(x_ref, y_ref, alpha_ref, bias_ref, o_ref):
    """o = alpha * normalize(x + y) + bias, per row; unbiased std (torch.std)."""
    z = x_ref[...] + y_ref[...]                        # dropout = identity (eval)
    d = z.shape[-1]
    mean = jnp.mean(z, axis=-1, keepdims=True)
    c = z - mean
    std = jnp.sqrt(jnp.sum(c * c, axis=-1, keepdims=True) * (1.0 / (d - 1)))
    o_ref[...] = alpha_ref[0] * (c / (std + 1e-6)) + bias_ref[0]


def _ffn_add_norm_kernel(x_ref, w1_ref, b1_ref, w2_ref, b2_ref,
                         alpha_ref, bias_ref, o_ref):
    """Fused sublayer (FFN) + residual add + normalize epilogue.

    x: (tile_m, D), w1: (D, DH), w2: (DH, D) -- weights pre-transposed (in, out)
    and resident across grid steps.  One HBM read of x, one HBM write of o.
    """
    x = x_ref[...]
    h = jnp.dot(x, w1_ref[...], preferred_element_type=jnp.float32) + b1_ref[...]
    h = jnp.maximum(h, 0.0)                            # ReLU
    y = jnp.dot(h, w2_ref[...], preferred_element_type=jnp.float32) + b2_ref[...]
    z = x + y                                          # residual (dropout = identity)
    d = z.shape[-1]
    mean = jnp.mean(z, axis=-1, keepdims=True)
    c = z - mean
    std = jnp.sqrt(jnp.sum(c * c, axis=-1, keepdims=True) * (1.0 / (d - 1)))
    o_ref[...] = alpha_ref[0] * (c / (std + 1e-6)) + bias_ref[0]


# ----------------------------- tiling helper -----------------------------

def _pick_row_tile(m, bytes_per_row, max_tile=512, vmem_budget=32 * 1024 * 1024):
    """Largest row tile that (a) divides M, (b) is a multiple of 8 sublanes,
    (c) keeps double-buffered activations under a conservative VMEM budget
    (safe on v7x's smaller VMEM as well as v5e/v6e)."""
    if m % 8 != 0:
        return m                       # full-array block is always legal
    cap = min(max_tile, m, max(8, vmem_budget // max(bytes_per_row, 1)))
    t = max(8, cap - (cap % 8))
    while m % t != 0:
        t -= 8
    return t


# ----------------------------- wrappers -----------------------------

def residual_connection(x, sublayer, alpha, bias):
    """Generic ResidualConnection: sublayer is any JAX callable.
    The add + normalize is a tiled, pipelined Pallas kernel."""
    y = sublayer(x)
    D = x.shape[-1]
    x2 = x.reshape(-1, D).astype(jnp.float32)
    y2 = y.reshape(-1, D).astype(jnp.float32)
    M = x2.shape[0]
    tile_m = _pick_row_tile(M, bytes_per_row=2 * 2 * D * 4)   # x & y, double-buffered
    out = pl.pallas_call(
        _add_norm_kernel,
        out_shape=jax.ShapeDtypeStruct((M, D), jnp.float32),
        grid=(M // tile_m,),
        in_specs=[
            pl.BlockSpec((tile_m, D), lambda i: (i, 0)),
            pl.BlockSpec((tile_m, D), lambda i: (i, 0)),
            pl.BlockSpec(memory_space=SMEM),               # alpha (1,)
            pl.BlockSpec(memory_space=SMEM),               # bias  (1,)
        ],
        out_specs=pl.BlockSpec((tile_m, D), lambda i: (i, 0)),
        compiler_params=pltpu.CompilerParams(dimension_semantics=("parallel",)),
    )(x2, y2, alpha, bias)
    return out.reshape(x.shape)


def residual_connection_ffn(x, w1, b1, w2, b2, alpha, bias):
    """Fused ResidualConnection with an FFN sublayer: the whole
    norm(x + FFN(x)) is a single pallas_call (sublayer fused, norm as epilogue)."""
    D = x.shape[-1]
    DH = w1.shape[1]
    x2 = x.reshape(-1, D).astype(jnp.float32)
    M = x2.shape[0]
    # double-buffered (x tile + out tile) + hidden tile, f32
    tile_m = _pick_row_tile(M, bytes_per_row=(2 * D + DH) * 4 * 2)
    out = pl.pallas_call(
        _ffn_add_norm_kernel,
        out_shape=jax.ShapeDtypeStruct((M, D), jnp.float32),
        grid=(M // tile_m,),
        in_specs=[
            pl.BlockSpec((tile_m, D), lambda i: (i, 0)),   # x rows
            pl.BlockSpec((D, DH), lambda i: (0, 0)),       # w1 resident
            pl.BlockSpec((1, DH), lambda i: (0, 0)),       # b1
            pl.BlockSpec((DH, D), lambda i: (0, 0)),       # w2 resident
            pl.BlockSpec((1, D), lambda i: (0, 0)),        # b2
            pl.BlockSpec(memory_space=SMEM),               # alpha (1,)
            pl.BlockSpec(memory_space=SMEM),               # bias  (1,)
        ],
        out_specs=pl.BlockSpec((tile_m, D), lambda i: (i, 0)),
        compiler_params=pltpu.CompilerParams(dimension_semantics=("parallel",)),
    )(x2, w1, b1.reshape(1, DH), w2, b2.reshape(1, D), alpha, bias)
    return out.reshape(x.shape)


# ----------------------------- reference (pure JAX) -----------------------------

def _norm_ref(z, alpha, bias, eps=1e-6):
    mean = jnp.mean(z, axis=-1, keepdims=True)
    std = jnp.std(z, axis=-1, keepdims=True, ddof=1)   # torch.std: unbiased
    return alpha * ((z - mean) / (std + eps)) + bias


# ----------------------------- main -----------------------------

if __name__ == "__main__":
    B, S, D, DH = 2, 512, 128, 256      # small, lane-dense shapes (D multiple of 128)

    key = jax.random.PRNGKey(0)
    kx, kw1, kw2, kb1, kb2 = jax.random.split(key, 5)
    x = jax.random.normal(kx, (B, S, D), jnp.float32)

    # sublayer = FFN (Linear -> ReLU -> Linear); weights stored pre-transposed (in, out)
    w1 = jax.random.normal(kw1, (D, DH), jnp.float32) * 0.05
    b1 = jax.random.normal(kb1, (DH,), jnp.float32) * 0.01
    w2 = jax.random.normal(kw2, (DH, D), jnp.float32) * 0.05
    b2 = jax.random.normal(kb2, (D,), jnp.float32) * 0.01

    # NormalizeLayer parameters (non-trivial values to exercise scale/offset)
    alpha = jnp.full((1,), 1.25, jnp.float32)
    bias = jnp.full((1,), 0.10, jnp.float32)

    def sublayer(t):
        h = jnp.maximum(t.reshape(-1, D) @ w1 + b1, 0.0)
        return (h @ w2 + b2).reshape(t.shape)

    # 1) generic ResidualConnection (sublayer in JAX, fused add+norm Pallas kernel)
    out_generic = jax.block_until_ready(residual_connection(x, sublayer, alpha, bias))
    # 2) fully fused sublayer + residual + norm in one pallas_call
    out_fused = jax.block_until_ready(residual_connection_ffn(x, w1, b1, w2, b2, alpha, bias))

    ref = _norm_ref(x + sublayer(x), alpha, bias)

    assert out_generic.shape == x.shape, out_generic.shape
    assert out_fused.shape == x.shape, out_fused.shape
    assert bool(jnp.all(jnp.isfinite(out_generic)))
    assert bool(jnp.all(jnp.isfinite(out_fused)))
    err_g = float(jnp.max(jnp.abs(out_generic - ref)))
    err_f = float(jnp.max(jnp.abs(out_fused - ref)))
    assert err_g < 1e-4, err_g
    assert err_f < 2e-2, err_f          # MXU f32 matmul pass config vs XLA default

    print("KERNEL_OK")
</pallas_src>

<mosaic_0001>
module attributes {stable_mosaic.version = 11 : i64} {
  func.func @_add_norm_kernel(%arg0: i32, %arg1: memref<512x128xf32, #tpu.memory_space<vmem>>, %arg2: memref<512x128xf32, #tpu.memory_space<vmem>>, %arg3: memref<1xf32, #tpu.memory_space<smem>>, %arg4: memref<1xf32, #tpu.memory_space<smem>>, %arg5: memref<512x128xf32, #tpu.memory_space<vmem>>) attributes {dimension_semantics = [#tpu.dimension_semantics<parallel>], iteration_bounds = array<i64: 2>, scalar_prefetch = 0 : i64, scratch_operands = 0 : i64, tpu.core_type = #tpu.core_type<tc>, window_params = [{transform_indices = @transform_0, window_bounds = array<i64: 512, 128>}, {transform_indices = @transform_1, window_bounds = array<i64: 512, 128>}, {transform_indices = @transform_2, window_bounds = array<i64: 1>}, {transform_indices = @transform_3, window_bounds = array<i64: 1>}, {transform_indices = @transform_4, window_bounds = array<i64: 512, 128>}]} {
    %c0 = arith.constant 0 : index
    %c0_0 = arith.constant 0 : index
    %0 = vector.load %arg1[%c0, %c0_0] : memref<512x128xf32, #tpu.memory_space<vmem>>, vector<512x128xf32>
    %c0_1 = arith.constant 0 : index
    %c0_2 = arith.constant 0 : index
    %1 = vector.load %arg2[%c0_1, %c0_2] : memref<512x128xf32, #tpu.memory_space<vmem>>, vector<512x128xf32>
    %2 = arith.addf %0, %1 : vector<512x128xf32>
    %cst = arith.constant dense<0.000000e+00> : vector<512xf32>
    %3 = vector.multi_reduction <add>, %2, %cst [1] : vector<512x128xf32> to vector<512xf32>
    %4 = vector.shape_cast %3 : vector<512xf32> to vector<512x1xf32>
    %cst_3 = arith.constant 1.280000e+02 : f32
    %5 = vector.broadcast %cst_3 : f32 to vector<512x1xf32>
    %6 = arith.divf %4, %5 : vector<512x1xf32>
    %7 = vector.broadcast %6 : vector<512x1xf32> to vector<512x128xf32>
    %8 = arith.subf %2, %7 : vector<512x128xf32>
    %9 = arith.mulf %8, %8 : vector<512x128xf32>
    %cst_4 = arith.constant dense<0.000000e+00> : vector<512xf32>
    %10 = vector.multi_reduction <add>, %9, %cst_4 [1] : vector<512x128xf32> to vector<512xf32>
    %11 = vector.shape_cast %10 : vector<512xf32> to vector<512x1xf32>
    %cst_5 = arith.constant 0.00787401571 : f32
    %12 = vector.broadcast %cst_5 : f32 to vector<512x1xf32>
    %13 = arith.mulf %11, %12 : vector<512x1xf32>
    %14 = math.sqrt %13 : vector<512x1xf32>
    %c0_6 = arith.constant 0 : index
    %15 = memref.load %arg3[%c0_6] : memref<1xf32, #tpu.memory_space<smem>>
    %cst_7 = arith.constant 9.99999997E-7 : f32
    %16 = vector.broadcast %cst_7 : f32 to vector<512x1xf32>
    %17 = arith.addf %14, %16 : vector<512x1xf32>
    %18 = vector.broadcast %17 : vector<512x1xf32> to vector<512x128xf32>
    %19 = arith.divf %8, %18 : vector<512x128xf32>
    %20 = vector.broadcast %15 : f32 to vector<512x128xf32>
    %21 = arith.mulf %20, %19 : vector<512x128xf32>
    %c0_8 = arith.constant 0 : index
    %22 = memref.load %arg4[%c0_8] : memref<1xf32, #tpu.memory_space<smem>>
    %23 = vector.broadcast %22 : f32 to vector<512x128xf32>
    %24 = arith.addf %21, %23 : vector<512x128xf32>
    %c0_9 = arith.constant 0 : index
    %c0_10 = arith.constant 0 : index
    %25 = vector.load %arg5[%c0_9, %c0_10] : memref<512x128xf32, #tpu.memory_space<vmem>>, vector<512x128xf32>
    tpu.vector_store %arg5[%c0_9, %c0_10], %24 {strides = array<i32>} : memref<512x128xf32, #tpu.memory_space<vmem>>, vector<512x128xf32>,
    return
  }
  func.func @transform_0(%arg0: i32) -> (i32, i32) {
    %c0_i32 = arith.constant 0 : i32
    %c0_i32_0 = arith.constant 0 : i32
    return %arg0, %c0_i32 : i32, i32
  }
  func.func @transform_1(%arg0: i32) -> (i32, i32) {
    %c0_i32 = arith.constant 0 : i32
    %c0_i32_0 = arith.constant 0 : i32
    return %arg0, %c0_i32 : i32, i32
  }
  func.func @transform_2(%arg0: i32) -> i32 {
    %c0_i32 = arith.constant 0 : i32
    %c0_i32_0 = arith.constant 0 : i32
    return %c0_i32 : i32
  }
  func.func @transform_3(%arg0: i32) -> i32 {
    %c0_i32 = arith.constant 0 : i32
    %c0_i32_0 = arith.constant 0 : i32
    return %c0_i32 : i32
  }
  func.func @transform_4(%arg0: i32) -> (i32, i32) {
    %c0_i32 = arith.constant 0 : i32
    %c0_i32_0 = arith.constant 0 : i32
    return %arg0, %c0_i32 : i32, i32
  }
}

</mosaic_0001>

<llo_original>
// kernel: tpu_custom_call.1
$region0: #{tpu_custom_call.1}
  #allocation0 [shape = 'u32[]', space=smem, size = 0x4, offset = 0x4, fixed_abs, tag = 'smem constant byte address 0x4 - core index']
  #allocation1 [shape = 'u32[72,128]{1,0:T(1,128)}', space=vmem, size = 0x9000, scoped, tag = 'internal scratch']
  #allocation2 [shape = 'f32[1]{0:T(128)S(6)}', space=smem, size = 0x200, scoped, tag = 'scoped memory for tpu_custom_call.1']
  #allocation3 [shape = 'f32[1]{0:T(128)S(6)}', space=smem, size = 0x200, scoped, tag = 'scoped memory for tpu_custom_call.1']
  %s0 = inlined_call_operand.hbm [shape: f32[1024,128], index: 0, kind: input, shape index: {}]
  %s1 = inlined_call_operand.hbm [shape: f32[1024,128], index: 1, kind: input, shape index: {}]
  %s2 = inlined_call_operand.<no memory space> [shape: f32[1], index: 2, kind: input, shape index: {}]
  %s3 = inlined_call_operand.<no memory space> [shape: f32[1], index: 3, kind: input, shape index: {}]
  %s4 = inlined_call_operand.hbm [shape: f32[1024,128], index: 4, kind: output, shape index: {}]
  %s5 = sld [smem:[#allocation0]]
  $region57: #{tpu_custom_call.1} parent=0
    _
  %s7 = ssub.s32 1, %s5
  %s8 = scalar_select 0, %s7, %s5
  %9 = sst [smem:[#allocation2]] %s2
  %10 = sst [smem:[#allocation3]] %s3
  $region1: #{tpu_custom_call.1} parent=0
    #allocation4 [shape = 'u8[524288]{0}', space=vmem, size = 0x80000, scoped, tag = 'input window, operand 0']
    #allocation5 [shape = 's32[2]{0}', space=sflag, size = 0x8, scoped, tag = 'scoped memory for tpu_custom_call.1']
    #allocation6 [shape = 's32[2]{0}', space=sflag, size = 0x8, scoped, tag = 'scoped memory for tpu_custom_call.1']
    #allocation7 [shape = 'u8[524288]{0}', space=vmem, size = 0x80000, scoped, tag = 'input window, operand 1']
    #allocation8 [shape = 's32[2]{0}', space=sflag, size = 0x8, scoped, tag = 'scoped memory for tpu_custom_call.1']
    #allocation9 [shape = 'u8[524288]{0}', space=vmem, size = 0x80000, scoped, tag = 'output window, operand 0']
    %11 = vsyncpa [#allocation5], 0
    %s12 = scalar_lea.sflag [#allocation5], 1
    %13 = vsyncpa %s12, 0
    %14 = vsyncpa [#allocation8], 0
    %s15 = scalar_lea.sflag [#allocation8], 1
    %16 = vsyncpa %s15, 0
    %17 = vsyncpa [#allocation6], 0
    %s18 = scalar_lea.sflag [#allocation6], 1
    %19 = vsyncpa %s18, 0
    loop: start=0, step=1, limit=4
    $region2: #{tpu_custom_call.1} parent=1 // loop_pre_header
      _
    $region3: #{tpu_custom_call.1} parent=1 // loop_header
      %s21 = sphi 0, %s25
      %p22 = scmp.ge.s32.totalorder %s21, 4
      %s31 = sphi 0, %s33
      %s34 = sphi 0, %s31
      %s35 = sphi 0, %s34
      %s51 = sphi 0, %s35
      %s57 = sphi 0, %s59
      %s60 = sphi 0, %s57
      %s61 = sphi 0, %s60
      %s77 = sphi 0, %s61
      %s81 = sphi 0, %s81
      %s83 = sphi 0, %s81
      %s84 = sphi 0, %s83
      %s98 = sphi 0, %s84
      %s102 = sphi 0, %s102
      %s104 = sphi 0, %s102
      %s105 = sphi 0, %s104
      %s119 = sphi 0, %s105
      %s125 = sphi 0, %s127
      %s128 = sphi 0, %s125
      %s129 = sphi 0, %s128
      %s145 = sphi 0, %s129
    $region4: #{tpu_custom_call.1} parent=1 // loop_header_branch
      %24 = sbr.rel (%p22) target = $region8
    $region5: #{tpu_custom_call.1} parent=1 // loop_body
      %s26 = ssub.s32 %s21, 1
      %s27 = ssub.s32 %s21, 2
      %s28 = sadd.s32 %s21, 1
      %s29 = ssub.s32 %s21, %s28
      %p30 = scmp.eq.s32.totalorder %s29, 0
      %s32 = sadd.s32 %s31, 1
      %s33 = scalar_select %p30, %s31, %s32
      %p36 = pneg %p30
      %p37 = scmp.eq.s32.totalorder %s21, 1
      %p38 = por %p36, %p37
      %p39 = scmp.ne.s32.totalorder %s31, %s34
      %p40 = scmp.eq.s32.totalorder %s21, 0
      %p41 = por %p39, %p40
      %p42 = scmp.ne.s32.totalorder %s31, %s34
      %p43 = scmp.eq.s32.totalorder %s26, 1
      %p44 = por %p42, %p43
      %p45 = scmp.ne.s32.totalorder %s34, %s35
      %p46 = scmp.eq.s32.totalorder %s26, 0
      %p47 = por %p45, %p46
      %p48 = scmp.ne.s32.totalorder %s34, %s35
      %p49 = scmp.eq.s32.totalorder %s27, 1
      %p50 = por %p48, %p49
      %p52 = scmp.ne.s32.totalorder %s35, %s51
      %p53 = scmp.eq.s32.totalorder %s27, 0
      %p54 = por %p52, %p53
      %s55 = ssub.s32 %s21, %s28
      %p56 = scmp.eq.s32.totalorder %s55, 0
      %s58 = sadd.s32 %s57, 1
      %s59 = scalar_select %p56, %s57, %s58
      %p62 = pneg %p56
      %p63 = scmp.eq.s32.totalorder %s21, 1
      %p64 = por %p62, %p63
      %p65 = scmp.ne.s32.totalorder %s57, %s60
      %p66 = scmp.eq.s32.totalorder %s21, 0
      %p67 = por %p65, %p66
      %p68 = scmp.ne.s32.totalorder %s57, %s60
      %p69 = scmp.eq.s32.totalorder %s26, 1
      %p70 = por %p68, %p69
      %p71 = scmp.ne.s32.totalorder %s60, %s61
      %p72 = scmp.eq.s32.totalorder %s26, 0
      %p73 = por %p71, %p72
      %p74 = scmp.ne.s32.totalorder %s60, %s61
      %p75 = scmp.eq.s32.totalorder %s27, 1
      %p76 = por %p74, %p75
      %p78 = scmp.ne.s32.totalorder %s61, %s77
      %p79 = scmp.eq.s32.totalorder %s27, 0
      %p80 = por %p78, %p79
      %s82 = sadd.s32 %s81, 1
      %p85 = scmp.eq.s32.totalorder %s21, 1
      %p86 = scmp.ne.s32.totalorder %s81, %s83
      %p87 = scmp.eq.s32.totalorder %s21, 0
      %p88 = por %p86, %p87
      %p89 = scmp.ne.s32.totalorder %s81, %s83
      %p90 = scmp.eq.s32.totalorder %s26, 1
      %p91 = por %p89, %p90
      %p92 = scmp.ne.s32.totalorder %s83, %s84
      %p93 = scmp.eq.s32.totalorder %s26, 0
      %p94 = por %p92, %p93
      %p95 = scmp.ne.s32.totalorder %s83, %s84
      %p96 = scmp.eq.s32.totalorder %s27, 1
      %p97 = por %p95, %p96
      %p99 = scmp.ne.s32.totalorder %s84, %s98
      %p100 = scmp.eq.s32.totalorder %s27, 0
      %p101 = por %p99, %p100
      %s103 = sadd.s32 %s102, 1
      %p106 = scmp.eq.s32.totalorder %s21, 1
      %p107 = scmp.ne.s32.totalorder %s102, %s104
      %p108 = scmp.eq.s32.totalorder %s21, 0
      %p109 = por %p107, %p108
      %p110 = scmp.ne.s32.totalorder %s102, %s104
      %p111 = scmp.eq.s32.totalorder %s26, 1
      %p112 = por %p110, %p111
      %p113 = scmp.ne.s32.totalorder %s104, %s105
      %p114 = scmp.eq.s32.totalorder %s26, 0
      %p115 = por %p113, %p114
      %p116 = scmp.ne.s32.totalorder %s104, %s105
      %p117 = scmp.eq.s32.totalorder %s27, 1
      %p118 = por %p116, %p117
      %p120 = scmp.ne.s32.totalorder %s105, %s119
      %p121 = scmp.eq.s32.totalorder %s27, 0
      %p122 = por %p120, %p121
      %s123 = ssub.s32 %s21, %s28
      %p124 = scmp.eq.s32.totalorder %s123, 0
      %s126 = sadd.s32 %s125, 1
      %s127 = scalar_select %p124, %s125, %s126
      %p130 = pneg %p124
      %p131 = scmp.eq.s32.totalorder %s21, 1
      %p132 = por %p130, %p131
      %p133 = scmp.ne.s32.totalorder %s125, %s128
      %p134 = scmp.eq.s32.totalorder %s21, 0
      %p135 = por %p133, %p134
      %p136 = scmp.ne.s32.totalorder %s125, %s128
      %p137 = scmp.eq.s32.totalorder %s26, 1
      %p138 = por %p136, %p137
      %p139 = scmp.ne.s32.totalorder %s128, %s129
      %p140 = scmp.eq.s32.totalorder %s26, 0
      %p141 = por %p139, %p140
      %p142 = scmp.ne.s32.totalorder %s128, %s129
      %p143 = scmp.eq.s32.totalorder %s27, 1
      %p144 = por %p142, %p143
      %p146 = scmp.ne.s32.totalorder %s129, %s145
      %p147 = scmp.eq.s32.totalorder %s27, 0
      %p148 = por %p146, %p147
      %p149 = scmp.le.s32.totalorder 1, %s21
      %p150 = scmp.lt.s32.totalorder %s21, 3
      %p151 = pnand %p149, %p150
      %p152 = pneg %p151
      // Predicated region
      $region9: #{tpu_custom_call.1} parent=5 // pred_check
        _
      $region10: #{tpu_custom_call.1} parent=5 // pred_check_branch
        %154 = sbr.rel (%p151) target = $region12
      $region11: #{tpu_custom_call.1} parent=5 // pred_region
        %s155 = ssub.s32 %s21, 1
        // Predicated region
        $region13: #{tpu_custom_call.1} parent=11 // pred_check
          %p156 = pneg %p94
        $region14: #{tpu_custom_call.1} parent=11 // pred_check_branch
          %158 = sbr.rel (%p156) target = $region16
        $region15: #{tpu_custom_call.1} parent=11 // pred_region
          _
        $region16: #{tpu_custom_call.1} parent=11 // pred_fallthru
          _
        // Predicated region
        $region17: #{tpu_custom_call.1} parent=11 // pred_check
          %p159 = pneg %p115
        $region18: #{tpu_custom_call.1} parent=11 // pred_check_branch
          %161 = sbr.rel (%p159) target = $region20
        $region19: #{tpu_custom_call.1} parent=11 // pred_region
          _
        $region20: #{tpu_custom_call.1} parent=11 // pred_fallthru
          _
      $region12: #{tpu_custom_call.1} parent=5 // pred_fallthru
        _
      %p162 = scmp.lt.s32.totalorder %s21, 2
      // Predicated region
      $region21: #{tpu_custom_call.1} parent=5 // pred_check
        %p163 = pneg %p162
      $region22: #{tpu_custom_call.1} parent=5 // pred_check_branch
        %165 = sbr.rel (%p163) target = $region24
      $region23: #{tpu_custom_call.1} parent=5 // pred_region
        // Predicated region
        $region25: #{tpu_custom_call.1} parent=23 // pred_check
          %p166 = pneg %p41
        $region26: #{tpu_custom_call.1} parent=23 // pred_check_branch
          %168 = sbr.rel (%p166) target = $region28
        $region27: #{tpu_custom_call.1} parent=23 // pred_region
          %s169 = sand.u32 %s31, 1
          %s170 = scalar_lea.sflag [#allocation5], %s169
          %s171 = sand.u32 %s31, 1
          %s172 = smul.addr %s171, 512
          %s173 = scalar_lea.vmem [#allocation4], %s172
          %s174 = smul.u32 64, %s21
          %176 = vsyncadd %s170, 0
          %s177 = smul.addr %s174, 8
          %s178 = scalar_lea.hbm %s0, %s177
          %s179 = sshll.u32 %s178, 4
          %s180 = int_to_ptr.hbm [resolvable:$true] %s179
          %s181 = sshll.u32 %s173, 4
          %s182 = int_to_ptr.vmem [resolvable:$true] %s181
          %187 = dma.hbm_to_vmem [thread:$0]  %s180, 8192, %s182, %s170, 128, 128, 8
        $region28: #{tpu_custom_call.1} parent=23 // pred_fallthru
          _
        // Predicated region
        $region29: #{tpu_custom_call.1} parent=23 // pred_check
          %p188 = pneg %p67
        $region30: #{tpu_custom_call.1} parent=23 // pred_check_branch
          %190 = sbr.rel (%p188) target = $region32
        $region31: #{tpu_custom_call.1} parent=23 // pred_region
          %s191 = sand.u32 %s57, 1
          %s192 = scalar_lea.sflag [#allocation8], %s191
          %s193 = sand.u32 %s57, 1
          %s194 = smul.addr %s193, 512
          %s195 = scalar_lea.vmem [#allocation7], %s194
          %s196 = smul.u32 64, %s21
          %198 = vsyncadd %s192, 0
          %s199 = smul.addr %s196, 8
          %s200 = scalar_lea.hbm %s1, %s199
          %s201 = sshll.u32 %s200, 4
          %s202 = int_to_ptr.hbm [resolvable:$true] %s201
          %s203 = sshll.u32 %s195, 4
          %s204 = int_to_ptr.vmem [resolvable:$true] %s203
          %209 = dma.hbm_to_vmem [thread:$0]  %s202, 8192, %s204, %s192, 128, 128, 8
        $region32: #{tpu_custom_call.1} parent=23 // pred_fallthru
          _
      $region24: #{tpu_custom_call.1} parent=5 // pred_fallthru
        _
      %p210 = scmp.le.s32.totalorder 1, %s21
      %p211 = scmp.lt.s32.totalorder %s21, 3
      %p212 = pnand %p210, %p211
      %p213 = pneg %p212
      // Predicated region
      $region33: #{tpu_custom_call.1} parent=5 // pred_check
        _
      $region34: #{tpu_custom_call.1} parent=5 // pred_check_branch
        %215 = sbr.rel (%p212) target = $region36
      $region35: #{tpu_custom_call.1} parent=5 // pred_region
        %s216 = ssub.s32 %s21, 1
        %s217 = sand.u32 %s34, 1
        %s218 = scalar_lea.sflag [#allocation5], %s217
        %s219 = sand.u32 %s34, 1
        %s220 = smul.addr %s219, 512
        %s221 = scalar_lea.vmem [#allocation4], %s220
        // Predicated region
        $region37: #{tpu_custom_call.1} parent=35 // pred_check
          %p222 = pneg %p47
        $region38: #{tpu_custom_call.1} parent=35 // pred_check_branch
          %224 = sbr.rel (%p222) target = $region40
        $region39: #{tpu_custom_call.1} parent=35 // pred_region
          %226 = dma.done %s218, 8192
        $region40: #{tpu_custom_call.1} parent=35 // pred_fallthru
          _
        %s227 = sand.u32 %s60, 1
        %s228 = scalar_lea.sflag [#allocation8], %s227
        %s229 = sand.u32 %s60, 1
        %s230 = smul.addr %s229, 512
        %s231 = scalar_lea.vmem [#allocation7], %s230
        // Predicated region
        $region41: #{tpu_custom_call.1} parent=35 // pred_check
          %p232 = pneg %p73
        $region42: #{tpu_custom_call.1} parent=35 // pred_check_branch
          %234 = sbr.rel (%p232) target = $region44
        $region43: #{tpu_custom_call.1} parent=35 // pred_region
          %236 = dma.done %s228, 8192
        $region44: #{tpu_custom_call.1} parent=35 // pred_fallthru
          _
        %s237 = sand.u32 %s34, 1
        %s238 = scalar_lea.sflag [#allocation5], %s237
        %s239 = sand.u32 %s34, 1
        %s240 = smul.addr %s239, 512
        %s241 = scalar_lea.vmem [#allocation4], %s240
        %p242 = pneg %p47
        %p243 = pneg %p44
        %s244 = sand.u32 %s60, 1
        %s245 = scalar_lea.sflag [#allocation8], %s244
        %s246 = sand.u32 %s60, 1
        %s247 = smul.addr %s246, 512
        %s248 = scalar_lea.vmem [#allocation7], %s247
        %p249 = pneg %p73
        %p250 = pneg %p70
        %p251 = pneg %p94
        %p252 = pneg %p91
        %p253 = pneg %p115
        %p254 = pneg %p112
        %p255 = pneg %p141
        %p256 = pneg %p138
        %s257 = sand.u32 %s128, 1
        %s258 = scalar_lea.sflag [#allocation6], %s257
        %s259 = sand.u32 %s128, 1
        %s260 = smul.addr %s259, 512
        %s261 = scalar_lea.vmem [#allocation9], %s260
        %s262 = smul.u32 64, %s26
        %s263 = smul.u32 64, %s26
        %s264 = smul.u32 64, %s26
        %v265 = vld [vmem:[%s221] sm:$0xff]
        %v266 = vld [vmem:[%s221 + $0x8] sm:$0xff]
        %v267 = vld [vmem:[%s221 + $0x10] sm:$0xff]
        %v268 = vld [vmem:[%s221 + $0x18] sm:$0xff]
        %v269 = vld [vmem:[%s221 + $0x20] sm:$0xff]
        %v270 = vld [vmem:[%s221 + $0x28] sm:$0xff]
        %v271 = vld [vmem:[%s221 + $0x30] sm:$0xff]
        %v272 = vld [vmem:[%s221 + $0x38] sm:$0xff]
        %v273 = vld [vmem:[%s221 + $0x40] sm:$0xff]
        %v274 = vld [vmem:[%s221 + $0x48] sm:$0xff]
        %v275 = vld [vmem:[%s221 + $0x50] sm:$0xff]
        %v276 = vld [vmem:[%s221 + $0x58] sm:$0xff]
        %v277 = vld [vmem:[%s221 + $0x60] sm:$0xff]
        %v278 = vld [vmem:[%s221 + $0x68] sm:$0xff]
        %v279 = vld [vmem:[%s221 + $0x70] sm:$0xff]
        %v280 = vld [vmem:[%s221 + $0x78] sm:$0xff]
        %v281 = vld [vmem:[%s221 + $0x80] sm:$0xff]
        %v282 = vld [vmem:[%s221 + $0x88] sm:$0xff]
        %v283 = vld [vmem:[%s221 + $0x90] sm:$0xff]
        %v284 = vld [vmem:[%s221 + $0x98] sm:$0xff]
        %v285 = vld [vmem:[%s221 + $0xa0] sm:$0xff]
        %v286 = vld [vmem:[%s221 + $0xa8] sm:$0xff]
        %v287 = vld [vmem:[%s221 + $0xb0] sm:$0xff]
        %v288 = vld [vmem:[%s221 + $0xb8] sm:$0xff]
        %v289 = vld [vmem:[%s221 + $0xc0] sm:$0xff]
        %v290 = vld [vmem:[%s221 + $0xc8] sm:$0xff]
        %v291 = vld [vmem:[%s221 + $0xd0] sm:$0xff]
        %v292 = vld [vmem:[%s221 + $0xd8] sm:$0xff]
        %v293 = vld [vmem:[%s221 + $0xe0] sm:$0xff]
        %v294 = vld [vmem:[%s221 + $0xe8] sm:$0xff]
        %v295 = vld [vmem:[%s221 + $0xf0] sm:$0xff]
        %v296 = vld [vmem:[%s221 + $0xf8] sm:$0xff]
        %v297 = vld [vmem:[%s221 + $0x100] sm:$0xff]
        %v298 = vld [vmem:[%s221 + $0x108] sm:$0xff]
        %v299 = vld [vmem:[%s221 + $0x110] sm:$0xff]
        %v300 = vld [vmem:[%s221 + $0x118] sm:$0xff]
        %v301 = vld [vmem:[%s221 + $0x120] sm:$0xff]
        %v302 = vld [vmem:[%s221 + $0x128] sm:$0xff]
        %v303 = vld [vmem:[%s221 + $0x130] sm:$0xff]
        %v304 = vld [vmem:[%s221 + $0x138] sm:$0xff]
        %v305 = vld [vmem:[%s221 + $0x140] sm:$0xff]
        %v306 = vld [vmem:[%s221 + $0x148] sm:$0xff]
        %v307 = vld [vmem:[%s221 + $0x150] sm:$0xff]
        %v308 = vld [vmem:[%s221 + $0x158] sm:$0xff]
        %v309 = vld [vmem:[%s221 + $0x160] sm:$0xff]
        %v310 = vld [vmem:[%s221 + $0x168] sm:$0xff]
        %v311 = vld [vmem:[%s221 + $0x170] sm:$0xff]
        %v312 = vld [vmem:[%s221 + $0x178] sm:$0xff]
        %v313 = vld [vmem:[%s221 + $0x180] sm:$0xff]
        %v314 = vld [vmem:[%s221 + $0x188] sm:$0xff]
        %v315 = vld [vmem:[%s221 + $0x190] sm:$0xff]
        %v316 = vld [vmem:[%s221 + $0x198] sm:$0xff]
        %v317 = vld [vmem:[%s221 + $0x1a0] sm:$0xff]
        %v318 = vld [vmem:[%s221 + $0x1a8] sm:$0xff]
        %v319 = vld [vmem:[%s221 + $0x1b0] sm:$0xff]
        %v320 = vld [vmem:[%s221 + $0x1b8] sm:$0xff]
        %v321 = vld [vmem:[%s221 + $0x1c0] sm:$0xff]
        %v322 = vld [vmem:[%s221 + $0x1c8] sm:$0xff]
        %v323 = vld [vmem:[%s221 + $0x1d0] sm:$0xff]
        %v324 = vld [vmem:[%s221 + $0x1d8] sm:$0xff]
        %v325 = vld [vmem:[%s221 + $0x1e0] sm:$0xff]
        %v326 = vld [vmem:[%s221 + $0x1e8] sm:$0xff]
        %v327 = vld [vmem:[%s221 + $0x1f0] sm:$0xff]
        %v328 = vld [vmem:[%s221 + $0x1f8] sm:$0xff]
        %v329 = vld [vmem:[%s231] sm:$0xff]
        %v330 = vld [vmem:[%s231 + $0x8] sm:$0xff]
        %v331 = vld [vmem:[%s231 + $0x10] sm:$0xff]
        %v332 = vld [vmem:[%s231 + $0x18] sm:$0xff]
        %v333 = vld [vmem:[%s231 + $0x20] sm:$0xff]
        %v334 = vld [vmem:[%s231 + $0x28] sm:$0xff]
        %v335 = vld [vmem:[%s231 + $0x30] sm:$0xff]
        %v336 = vld [vmem:[%s231 + $0x38] sm:$0xff]
        %v337 = vld [vmem:[%s231 + $0x40] sm:$0xff]
        %v338 = vld [vmem:[%s231 + $0x48] sm:$0xff]
        %v339 = vld [vmem:[%s231 + $0x50] sm:$0xff]
        %v340 = vld [vmem:[%s231 + $0x58] sm:$0xff]
        %v341 = vld [vmem:[%s231 + $0x60] sm:$0xff]
        %v342 = vld [vmem:[%s231 + $0x68] sm:$0xff]
        %v343 = vld [vmem:[%s231 + $0x70] sm:$0xff]
        %v344 = vld [vmem:[%s231 + $0x78] sm:$0xff]
        %v345 = vld [vmem:[%s231 + $0x80] sm:$0xff]
        %v346 = vld [vmem:[%s231 + $0x88] sm:$0xff]
        %v347 = vld [vmem:[%s231 + $0x90] sm:$0xff]
        %v348 = vld [vmem:[%s231 + $0x98] sm:$0xff]
        %v349 = vld [vmem:[%s231 + $0xa0] sm:$0xff]
        %v350 = vld [vmem:[%s231 + $0xa8] sm:$0xff]
        %v351 = vld [vmem:[%s231 + $0xb0] sm:$0xff]
        %v352 = vld [vmem:[%s231 + $0xb8] sm:$0xff]
        %v353 = vld [vmem:[%s231 + $0xc0] sm:$0xff]
        %v354 = vld [vmem:[%s231 + $0xc8] sm:$0xff]
        %v355 = vld [vmem:[%s231 + $0xd0] sm:$0xff]
        %v356 = vld [vmem:[%s231 + $0xd8] sm:$0xff]
        %v357 = vld [vmem:[%s231 + $0xe0] sm:$0xff]
        %v358 = vld [vmem:[%s231 + $0xe8] sm:$0xff]
        %v359 = vld [vmem:[%s231 + $0xf0] sm:$0xff]
        %v360 = vld [vmem:[%s231 + $0xf8] sm:$0xff]
        %v361 = vld [vmem:[%s231 + $0x100] sm:$0xff]
        %v362 = vld [vmem:[%s231 + $0x108] sm:$0xff]
        %v363 = vld [vmem:[%s231 + $0x110] sm:$0xff]
        %v364 = vld [vmem:[%s231 + $0x118] sm:$0xff]
        %v365 = vld [vmem:[%s231 + $0x120] sm:$0xff]
        %v366 = vld [vmem:[%s231 + $0x128] sm:$0xff]
        %v367 = vld [vmem:[%s231 + $0x130] sm:$0xff]
        %v368 = vld [vmem:[%s231 + $0x138] sm:$0xff]
        %v369 = vld [vmem:[%s231 + $0x140] sm:$0xff]
        %v370 = vld [vmem:[%s231 + $0x148] sm:$0xff]
        %v371 = vld [vmem:[%s231 + $0x150] sm:$0xff]
        %v372 = vld [vmem:[%s231 + $0x158] sm:$0xff]
        %v373 = vld [vmem:[%s231 + $0x160] sm:$0xff]
        %v374 = vld [vmem:[%s231 + $0x168] sm:$0xff]
        %v375 = vld [vmem:[%s231 + $0x170] sm:$0xff]
        %v376 = vld [vmem:[%s231 + $0x178] sm:$0xff]
        %v377 = vld [vmem:[%s231 + $0x180] sm:$0xff]
        %v378 = vld [vmem:[%s231 + $0x188] sm:$0xff]
        %v379 = vld [vmem:[%s231 + $0x190] sm:$0xff]
        %v380 = vld [vmem:[%s231 + $0x198] sm:$0xff]
        %v381 = vld [vmem:[%s231 + $0x1a0] sm:$0xff]
        %v382 = vld [vmem:[%s231 + $0x1a8] sm:$0xff]
        %v383 = vld [vmem:[%s231 + $0x1b0] sm:$0xff]
        %v384 = vld [vmem:[%s231 + $0x1b8] sm:$0xff]
        %v385 = vld [vmem:[%s231 + $0x1c0] sm:$0xff]
        %v386 = vld [vmem:[%s231 + $0x1c8] sm:$0xff]
        %v387 = vld [vmem:[%s231 + $0x1d0] sm:$0xff]
        %v388 = vld [vmem:[%s231 + $0x1d8] sm:$0xff]
        %v389 = vld [vmem:[%s231 + $0x1e0] sm:$0xff]
        %v390 = vld [vmem:[%s231 + $0x1e8] sm:$0xff]
        %v391 = vld [vmem:[%s231 + $0x1f0] sm:$0xff]
        %v392 = vld [vmem:[%s231 + $0x1f8] sm:$0xff]
        %v393 = vadd.f32 %v265, %v329
        %v394 = vadd.f32 %v266, %v330
        %v395 = vadd.f32 %v267, %v331
        %v396 = vadd.f32 %v268, %v332
        %v397 = vadd.f32 %v269, %v333
        %v398 = vadd.f32 %v270, %v334
        %v399 = vadd.f32 %v271, %v335
        %v400 = vadd.f32 %v272, %v336
        %v401 = vadd.f32 %v273, %v337
        %v402 = vadd.f32 %v274, %v338
        %v403 = vadd.f32 %v275, %v339
        %v404 = vadd.f32 %v276, %v340
        %v405 = vadd.f32 %v277, %v341
        %v406 = vadd.f32 %v278, %v342
        %v407 = vadd.f32 %v279, %v343
        %v408 = vadd.f32 %v280, %v344
        %v409 = vadd.f32 %v281, %v345
        %v410 = vadd.f32 %v282, %v346
        %v411 = vadd.f32 %v283, %v347
        %v412 = vadd.f32 %v284, %v348
        %v413 = vadd.f32 %v285, %v349
        %v414 = vadd.f32 %v286, %v350
        %v415 = vadd.f32 %v287, %v351
        %v416 = vadd.f32 %v288, %v352
        %v417 = vadd.f32 %v289, %v353
        %v418 = vadd.f32 %v290, %v354
        %v419 = vadd.f32 %v291, %v355
        %v420 = vadd.f32 %v292, %v356
        %v421 = vadd.f32 %v293, %v357
        %v422 = vadd.f32 %v294, %v358
        %v423 = vadd.f32 %v295, %v359
        %v424 = vadd.f32 %v296, %v360
        %v425 = vadd.f32 %v297, %v361
        %v426 = vadd.f32 %v298, %v362
        %v427 = vadd.f32 %v299, %v363
        %v428 = vadd.f32 %v300, %v364
        %v429 = vadd.f32 %v301, %v365
        %v430 = vadd.f32 %v302, %v366
        %v431 = vadd.f32 %v303, %v367
        %v432 = vadd.f32 %v304, %v368
        %v433 = vadd.f32 %v305, %v369
        %v434 = vadd.f32 %v306, %v370
        %v435 = vadd.f32 %v307, %v371
        %v436 = vadd.f32 %v308, %v372
        %v437 = vadd.f32 %v309, %v373
        %v438 = vadd.f32 %v310, %v374
        %v439 = vadd.f32 %v311, %v375
        %v440 = vadd.f32 %v312, %v376
        %v441 = vadd.f32 %v313, %v377
        %v442 = vadd.f32 %v314, %v378
        %v443 = vadd.f32 %v315, %v379
        %v444 = vadd.f32 %v316, %v380
        %v445 = vadd.f32 %v317, %v381
        %v446 = vadd.f32 %v318, %v382
        %v447 = vadd.f32 %v319, %v383
        %v448 = vadd.f32 %v320, %v384
        %v449 = vadd.f32 %v321, %v385
        %v450 = vadd.f32 %v322, %v386
        %v451 = vadd.f32 %v323, %v387
        %v452 = vadd.f32 %v324, %v388
        %v453 = vadd.f32 %v325, %v389
        %v454 = vadd.f32 %v326, %v390
        %v455 = vadd.f32 %v327, %v391
        %v456 = vadd.f32 %v328, %v392
        %457 = vadd.xlane.f32.xlu0 %v393
        %v458 = vpop.xlane.xlu0 %457
        %459 = vadd.xlane.f32.xlu0 %v394
        %v460 = vpop.xlane.xlu0 %459
        %461 = vadd.xlane.f32.xlu0 %v395
        %v462 = vpop.xlane.xlu0 %461
        %463 = vadd.xlane.f32.xlu0 %v396
        %v464 = vpop.xlane.xlu0 %463
        %465 = vadd.xlane.f32.xlu0 %v397
        %v466 = vpop.xlane.xlu0 %465
        %467 = vadd.xlane.f32.xlu0 %v398
        %v468 = vpop.xlane.xlu0 %467
        %469 = vadd.xlane.f32.xlu0 %v399
        %v470 = vpop.xlane.xlu0 %469
        %471 = vadd.xlane.f32.xlu0 %v400
        %v472 = vpop.xlane.xlu0 %471
        %473 = vadd.xlane.f32.xlu0 %v401
        %v474 = vpop.xlane.xlu0 %473
        %475 = vadd.xlane.f32.xlu0 %v402
        %v476 = vpop.xlane.xlu0 %475
        %477 = vadd.xlane.f32.xlu0 %v403
        %v478 = vpop.xlane.xlu0 %477
        %479 = vadd.xlane.f32.xlu0 %v404
        %v480 = vpop.xlane.xlu0 %479
        %481 = vadd.xlane.f32.xlu0 %v405
        %v482 = vpop.xlane.xlu0 %481
        %483 = vadd.xlane.f32.xlu0 %v406
        %v484 = vpop.xlane.xlu0 %483
        %485 = vadd.xlane.f32.xlu0 %v407
        %v486 = vpop.xlane.xlu0 %485
        %487 = vadd.xlane.f32.xlu0 %v408
        %v488 = vpop.xlane.xlu0 %487
        %489 = vadd.xlane.f32.xlu0 %v409
        %v490 = vpop.xlane.xlu0 %489
        %491 = vadd.xlane.f32.xlu0 %v410
        %v492 = vpop.xlane.xlu0 %491
        %493 = vadd.xlane.f32.xlu0 %v411
        %v494 = vpop.xlane.xlu0 %493
        %495 = vadd.xlane.f32.xlu0 %v412
        %v496 = vpop.xlane.xlu0 %495
        %497 = vadd.xlane.f32.xlu0 %v413
        %v498 = vpop.xlane.xlu0 %497
        %499 = vadd.xlane.f32.xlu0 %v414
        %v500 = vpop.xlane.xlu0 %499
        %501 = vadd.xlane.f32.xlu0 %v415
        %v502 = vpop.xlane.xlu0 %501
        %503 = vadd.xlane.f32.xlu0 %v416
        %v504 = vpop.xlane.xlu0 %503
        %505 = vadd.xlane.f32.xlu0 %v417
        %v506 = vpop.xlane.xlu0 %505
        %507 = vadd.xlane.f32.xlu0 %v418
        %v508 = vpop.xlane.xlu0 %507
        %509 = vadd.xlane.f32.xlu0 %v419
        %v510 = vpop.xlane.xlu0 %509
        %511 = vadd.xlane.f32.xlu0 %v420
        %v512 = vpop.xlane.xlu0 %511
        %513 = vadd.xlane.f32.xlu0 %v421
        %v514 = vpop.xlane.xlu0 %513
        %515 = vadd.xlane.f32.xlu0 %v422
        %v516 = vpop.xlane.xlu0 %515
        %517 = vadd.xlane.f32.xlu0 %v423
        %v518 = vpop.xlane.xlu0 %517
        %519 = vadd.xlane.f32.xlu0 %v424
        %v520 = vpop.xlane.xlu0 %519
        %521 = vadd.xlane.f32.xlu0 %v425
        %v522 = vpop.xlane.xlu0 %521
        %523 = vadd.xlane.f32.xlu0 %v426
        %v524 = vpop.xlane.xlu0 %523
        %525 = vadd.xlane.f32.xlu0 %v427
        %v526 = vpop.xlane.xlu0 %525
        %527 = vadd.xlane.f32.xlu0 %v428
        %v528 = vpop.xlane.xlu0 %527
        %529 = vadd.xlane.f32.xlu0 %v429
        %v530 = vpop.xlane.xlu0 %529
        %531 = vadd.xlane.f32.xlu0 %v430
        %v532 = vpop.xlane.xlu0 %531
        %533 = vadd.xlane.f32.xlu0 %v431
        %v534 = vpop.xlane.xlu0 %533
        %535 = vadd.xlane.f32.xlu0 %v432
        %v536 = vpop.xlane.xlu0 %535
        %537 = vadd.xlane.f32.xlu0 %v433
        %v538 = vpop.xlane.xlu0 %537
        %539 = vadd.xlane.f32.xlu0 %v434
        %v540 = vpop.xlane.xlu0 %539
        %541 = vadd.xlane.f32.xlu0 %v435
        %v542 = vpop.xlane.xlu0 %541
        %543 = vadd.xlane.f32.xlu0 %v436
        %v544 = vpop.xlane.xlu0 %543
        %545 = vadd.xlane.f32.xlu0 %v437
        %v546 = vpop.xlane.xlu0 %545
        %547 = vadd.xlane.f32.xlu0 %v438
        %v548 = vpop.xlane.xlu0 %547
        %549 = vadd.xlane.f32.xlu0 %v439
        %v550 = vpop.xlane.xlu0 %549
        %551 = vadd.xlane.f32.xlu0 %v440
        %v552 = vpop.xlane.xlu0 %551
        %553 = vadd.xlane.f32.xlu0 %v441
        %v554 = vpop.xlane.xlu0 %553
        %555 = vadd.xlane.f32.xlu0 %v442
        %v556 = vpop.xlane.xlu0 %555
        %557 = vadd.xlane.f32.xlu0 %v443
        %v558 = vpop.xlane.xlu0 %557
        %559 = vadd.xlane.f32.xlu0 %v444
        %v560 = vpop.xlane.xlu0 %559
        %561 = vadd.xlane.f32.xlu0 %v445
        %v562 = vpop.xlane.xlu0 %561
        %563 = vadd.xlane.f32.xlu0 %v446
        %v564 = vpop.xlane.xlu0 %563
        %565 = vadd.xlane.f32.xlu0 %v447
        %v566 = vpop.xlane.xlu0 %565
        %567 = vadd.xlane.f32.xlu0 %v448
        %v568 = vpop.xlane.xlu0 %567
        %569 = vadd.xlane.f32.xlu0 %v449
        %v570 = vpop.xlane.xlu0 %569
        %571 = vadd.xlane.f32.xlu0 %v450
        %v572 = vpop.xlane.xlu0 %571
        %573 = vadd.xlane.f32.xlu0 %v451
        %v574 = vpop.xlane.xlu0 %573
        %575 = vadd.xlane.f32.xlu0 %v452
        %v576 = vpop.xlane.xlu0 %575
        %577 = vadd.xlane.f32.xlu0 %v453
        %v578 = vpop.xlane.xlu0 %577
        %579 = vadd.xlane.f32.xlu0 %v454
        %v580 = vpop.xlane.xlu0 %579
        %581 = vadd.xlane.f32.xlu0 %v455
        %v582 = vpop.xlane.xlu0 %581
        %583 = vadd.xlane.f32.xlu0 %v456
        %v584 = vpop.xlane.xlu0 %583
        %v585 = vrcp.pop 128.0
        %v586 = vmul.f32 128.0, %v585
        %v587 = vsub.f32 1.0, %v586
        %v588 = vmul.f32 %v585, %v587
        %v589 = vadd.f32 %v585, %v588
        %vm590 = vweird.f32 %v585
        %v591 = vsel %vm590, %v585, %v589
        %v592 = vmul.f32 %v458, %v591
        %v593 = vmul.f32 %v460, %v591
        %v594 = vmul.f32 %v462, %v591
        %v595 = vmul.f32 %v464, %v591
        %v596 = vmul.f32 %v466, %v591
        %v597 = vmul.f32 %v468, %v591
        %v598 = vmul.f32 %v470, %v591
        %v599 = vmul.f32 %v472, %v591
        %v600 = vmul.f32 %v474, %v591
        %v601 = vmul.f32 %v476, %v591
        %v602 = vmul.f32 %v478, %v591
        %v603 = vmul.f32 %v480, %v591
        %v604 = vmul.f32 %v482, %v591
        %v605 = vmul.f32 %v484, %v591
        %v606 = vmul.f32 %v486, %v591
        %v607 = vmul.f32 %v488, %v591
        %v608 = vmul.f32 %v490, %v591
        %v609 = vmul.f32 %v492, %v591
        %v610 = vmul.f32 %v494, %v591
        %v611 = vmul.f32 %v496, %v591
        %v612 = vmul.f32 %v498, %v591
        %v613 = vmul.f32 %v500, %v591
        %v614 = vmul.f32 %v502, %v591
        %v615 = vmul.f32 %v504, %v591
        %v616 = vmul.f32 %v506, %v591
        %v617 = vmul.f32 %v508, %v591
        %v618 = vmul.f32 %v510, %v591
        %v619 = vmul.f32 %v512, %v591
        %v620 = vmul.f32 %v514, %v591
        %v621 = vmul.f32 %v516, %v591
        %v622 = vmul.f32 %v518, %v591
        %v623 = vmul.f32 %v520, %v591
        %v624 = vmul.f32 %v522, %v591
        %v625 = vmul.f32 %v524, %v591
        %v626 = vmul.f32 %v526, %v591
        %v627 = vmul.f32 %v528, %v591
        %v628 = vmul.f32 %v530, %v591
        %v629 = vmul.f32 %v532, %v591
        %v630 = vmul.f32 %v534, %v591
        %v631 = vmul.f32 %v536, %v591
        %v632 = vmul.f32 %v538, %v591
        %v633 = vmul.f32 %v540, %v591
        %v634 = vmul.f32 %v542, %v591
        %v635 = vmul.f32 %v544, %v591
        %v636 = vmul.f32 %v546, %v591
        %v637 = vmul.f32 %v548, %v591
        %v638 = vmul.f32 %v550, %v591
        %v639 = vmul.f32 %v552, %v591
        %v640 = vmul.f32 %v554, %v591
        %v641 = vmul.f32 %v556, %v591
        %v642 = vmul.f32 %v558, %v591
        %v643 = vmul.f32 %v560, %v591
        %v644 = vmul.f32 %v562, %v591
        %v645 = vmul.f32 %v564, %v591
        %v646 = vmul.f32 %v566, %v591
        %v647 = vmul.f32 %v568, %v591
        %v648 = vmul.f32 %v570, %v591
        %v649 = vmul.f32 %v572, %v591
        %v650 = vmul.f32 %v574, %v591
        %v651 = vmul.f32 %v576, %v591
        %v652 = vmul.f32 %v578, %v591
        %v653 = vmul.f32 %v580, %v591
        %v654 = vmul.f32 %v582, %v591
        %v655 = vmul.f32 %v584, %v591
        %v656 = vsub.f32 %v393, %v592
        %v657 = vsub.f32 %v394, %v593
        %v658 = vsub.f32 %v395, %v594
        %v659 = vsub.f32 %v396, %v595
        %v660 = vsub.f32 %v397, %v596
        %v661 = vsub.f32 %v398, %v597
        %v662 = vsub.f32 %v399, %v598
        %v663 = vsub.f32 %v400, %v599
        %v664 = vsub.f32 %v401, %v600
        %v665 = vsub.f32 %v402, %v601
        %v666 = vsub.f32 %v403, %v602
        %v667 = vsub.f32 %v404, %v603
        %v668 = vsub.f32 %v405, %v604
        %v669 = vsub.f32 %v406, %v605
        %v670 = vsub.f32 %v407, %v606
        %v671 = vsub.f32 %v408, %v607
        %v672 = vsub.f32 %v409, %v608
        %v673 = vsub.f32 %v410, %v609
        %v674 = vsub.f32 %v411, %v610
        %v675 = vsub.f32 %v412, %v611
        %v676 = vsub.f32 %v413, %v612
        %v677 = vsub.f32 %v414, %v613
        %v678 = vsub.f32 %v415, %v614
        %v679 = vsub.f32 %v416, %v615
        %v680 = vsub.f32 %v417, %v616
        %v681 = vsub.f32 %v418, %v617
        %v682 = vsub.f32 %v419, %v618
        %v683 = vsub.f32 %v420, %v619
        %v684 = vsub.f32 %v421, %v620
        %v685 = vsub.f32 %v422, %v621
        %v686 = vsub.f32 %v423, %v622
        %v687 = vsub.f32 %v424, %v623
        %v688 = vsub.f32 %v425, %v624
        %v689 = vsub.f32 %v426, %v625
        %v690 = vsub.f32 %v427, %v626
        %v691 = vsub.f32 %v428, %v627
        %v692 = vsub.f32 %v429, %v628
        %v693 = vsub.f32 %v430, %v629
        %v694 = vsub.f32 %v431, %v630
        %v695 = vsub.f32 %v432, %v631
        %v696 = vsub.f32 %v433, %v632
        %v697 = vsub.f32 %v434, %v633
        %v698 = vsub.f32 %v435, %v634
        %v699 = vsub.f32 %v436, %v635
        %v700 = vsub.f32 %v437, %v636
        %v701 = vsub.f32 %v438, %v637
        %v702 = vsub.f32 %v439, %v638
        %v703 = vsub.f32 %v440, %v639
        %v704 = vsub.f32 %v441, %v640
        %v705 = vsub.f32 %v442, %v641
        %v706 = vsub.f32 %v443, %v642
        %v707 = vsub.f32 %v444, %v643
        %v708 = vsub.f32 %v445, %v644
        %v709 = vsub.f32 %v446, %v645
        %v710 = vsub.f32 %v447, %v646
        %v711 = vsub.f32 %v448, %v647
        %v712 = vsub.f32 %v449, %v648
        %v713 = vsub.f32 %v450, %v649
        %v714 = vsub.f32 %v451, %v650
        %v715 = vsub.f32 %v452, %v651
        %v716 = vsub.f32 %v453, %v652
        %v717 = vsub.f32 %v454, %v653
        %v718 = vsub.f32 %v455, %v654
        %v719 = vsub.f32 %v456, %v655
        %v720 = vmul.f32 %v656, %v656
        %v721 = vmul.f32 %v657, %v657
        %v722 = vmul.f32 %v658, %v658
        %v723 = vmul.f32 %v659, %v659
        %v724 = vmul.f32 %v660, %v660
        %v725 = vmul.f32 %v661, %v661
        %v726 = vmul.f32 %v662, %v662
        %v727 = vmul.f32 %v663, %v663
        %v728 = vmul.f32 %v664, %v664
        %v729 = vmul.f32 %v665, %v665
        %v730 = vmul.f32 %v666, %v666
        %v731 = vmul.f32 %v667, %v667
        %v732 = vmul.f32 %v668, %v668
        %v733 = vmul.f32 %v669, %v669
        %v734 = vmul.f32 %v670, %v670
        %v735 = vmul.f32 %v671, %v671
        %v736 = vmul.f32 %v672, %v672
        %v737 = vmul.f32 %v673, %v673
        %v738 = vmul.f32 %v674, %v674
        %v739 = vmul.f32 %v675, %v675
        %v740 = vmul.f32 %v676, %v676
        %v741 = vmul.f32 %v677, %v677
        %v742 = vmul.f32 %v678, %v678
        %v743 = vmul.f32 %v679, %v679
        %v744 = vmul.f32 %v680, %v680
        %v745 = vmul.f32 %v681, %v681
        %v746 = vmul.f32 %v682, %v682
        %v747 = vmul.f32 %v683, %v683
        %v748 = vmul.f32 %v684, %v684
        %v749 = vmul.f32 %v685, %v685
        %v750 = vmul.f32 %v686, %v686
        %v751 = vmul.f32 %v687, %v687
        %v752 = vmul.f32 %v688, %v688
        %v753 = vmul.f32 %v689, %v689
        %v754 = vmul.f32 %v690, %v690
        %v755 = vmul.f32 %v691, %v691
        %v756 = vmul.f32 %v692, %v692
        %v757 = vmul.f32 %v693, %v693
        %v758 = vmul.f32 %v694, %v694
        %v759 = vmul.f32 %v695, %v695
        %v760 = vmul.f32 %v696, %v696
        %v761 = vmul.f32 %v697, %v697
        %v762 = vmul.f32 %v698, %v698
        %v763 = vmul.f32 %v699, %v699
        %v764 = vmul.f32 %v700, %v700
        %v765 = vmul.f32 %v701, %v701
        %v766 = vmul.f32 %v702, %v702
        %v767 = vmul.f32 %v703, %v703
        %v768 = vmul.f32 %v704, %v704
        %v769 = vmul.f32 %v705, %v705
        %v770 = vmul.f32 %v706, %v706
        %v771 = vmul.f32 %v707, %v707
        %v772 = vmul.f32 %v708, %v708
        %v773 = vmul.f32 %v709, %v709
        %v774 = vmul.f32 %v710, %v710
        %v775 = vmul.f32 %v711, %v711
        %v776 = vmul.f32 %v712, %v712
        %v777 = vmul.f32 %v713, %v713
        %v778 = vmul.f32 %v714, %v714
        %v779 = vmul.f32 %v715, %v715
        %v780 = vmul.f32 %v716, %v716
        %v781 = vmul.f32 %v717, %v717
        %v782 = vmul.f32 %v718, %v718
        %v783 = vmul.f32 %v719, %v719
        %784 = vadd.xlane.f32.xlu0 %v720
        %v785 = vpop.xlane.xlu0 %784
        %786 = vadd.xlane.f32.xlu0 %v721
        %v787 = vpop.xlane.xlu0 %786
        %788 = vadd.xlane.f32.xlu0 %v722
        %v789 = vpop.xlane.xlu0 %788
        %790 = vadd.xlane.f32.xlu0 %v723
        %v791 = vpop.xlane.xlu0 %790
        %792 = vadd.xlane.f32.xlu0 %v724
        %v793 = vpop.xlane.xlu0 %792
        %794 = vadd.xlane.f32.xlu0 %v725
        %v795 = vpop.xlane.xlu0 %794
        %796 = vadd.xlane.f32.xlu0 %v726
        %v797 = vpop.xlane.xlu0 %796
        %798 = vadd.xlane.f32.xlu0 %v727
        %v799 = vpop.xlane.xlu0 %798
        %800 = vadd.xlane.f32.xlu0 %v728
        %v801 = vpop.xlane.xlu0 %800
        %802 = vadd.xlane.f32.xlu0 %v729
        %v803 = vpop.xlane.xlu0 %802
        %804 = vadd.xlane.f32.xlu0 %v730
        %v805 = vpop.xlane.xlu0 %804
        %806 = vadd.xlane.f32.xlu0 %v731
        %v807 = vpop.xlane.xlu0 %806
        %808 = vadd.xlane.f32.xlu0 %v732
        %v809 = vpop.xlane.xlu0 %808
        %810 = vadd.xlane.f32.xlu0 %v733
        %v811 = vpop.xlane.xlu0 %810
        %812 = vadd.xlane.f32.xlu0 %v734
        %v813 = vpop.xlane.xlu0 %812
        %814 = vadd.xlane.f32.xlu0 %v735
        %v815 = vpop.xlane.xlu0 %814
        %816 = vadd.xlane.f32.xlu0 %v736
        %v817 = vpop.xlane.xlu0 %816
        %818 = vadd.xlane.f32.xlu0 %v737
        %v819 = vpop.xlane.xlu0 %818
        %820 = vadd.xlane.f32.xlu0 %v738
        %v821 = vpop.xlane.xlu0 %820
        %822 = vadd.xlane.f32.xlu0 %v739
        %v823 = vpop.xlane.xlu0 %822
        %824 = vadd.xlane.f32.xlu0 %v740
        %v825 = vpop.xlane.xlu0 %824
        %826 = vadd.xlane.f32.xlu0 %v741
        %v827 = vpop.xlane.xlu0 %826
        %828 = vadd.xlane.f32.xlu0 %v742
        %v829 = vpop.xlane.xlu0 %828
        %830 = vadd.xlane.f32.xlu0 %v743
        %v831 = vpop.xlane.xlu0 %830
        %832 = vadd.xlane.f32.xlu0 %v744
        %v833 = vpop.xlane.xlu0 %832
        %834 = vadd.xlane.f32.xlu0 %v745
        %v835 = vpop.xlane.xlu0 %834
        %836 = vadd.xlane.f32.xlu0 %v746
        %v837 = vpop.xlane.xlu0 %836
        %838 = vadd.xlane.f32.xlu0 %v747
        %v839 = vpop.xlane.xlu0 %838
        %840 = vadd.xlane.f32.xlu0 %v748
        %v841 = vpop.xlane.xlu0 %840
        %842 = vadd.xlane.f32.xlu0 %v749
        %v843 = vpop.xlane.xlu0 %842
        %844 = vadd.xlane.f32.xlu0 %v750
        %v845 = vpop.xlane.xlu0 %844
        %846 = vadd.xlane.f32.xlu0 %v751
        %v847 = vpop.xlane.xlu0 %846
        %848 = vadd.xlane.f32.xlu0 %v752
        %v849 = vpop.xlane.xlu0 %848
        %850 = vadd.xlane.f32.xlu0 %v753
        %v851 = vpop.xlane.xlu0 %850
        %852 = vadd.xlane.f32.xlu0 %v754
        %v853 = vpop.xlane.xlu0 %852
        %854 = vadd.xlane.f32.xlu0 %v755
        %v855 = vpop.xlane.xlu0 %854
        %856 = vadd.xlane.f32.xlu0 %v756
        %v857 = vpop.xlane.xlu0 %856
        %858 = vadd.xlane.f32.xlu0 %v757
        %v859 = vpop.xlane.xlu0 %858
        %860 = vadd.xlane.f32.xlu0 %v758
        %v861 = vpop.xlane.xlu0 %860
        %862 = vadd.xlane.f32.xlu0 %v759
        %v863 = vpop.xlane.xlu0 %862
        %864 = vadd.xlane.f32.xlu0 %v760
        %v865 = vpop.xlane.xlu0 %864
        %866 = vadd.xlane.f32.xlu0 %v761
        %v867 = vpop.xlane.xlu0 %866
        %868 = vadd.xlane.f32.xlu0 %v762
        %v869 = vpop.xlane.xlu0 %868
        %870 = vadd.xlane.f32.xlu0 %v763
        %v871 = vpop.xlane.xlu0 %870
        %872 = vadd.xlane.f32.xlu0 %v764
        %v873 = vpop.xlane.xlu0 %872
        %874 = vadd.xlane.f32.xlu0 %v765
        %v875 = vpop.xlane.xlu0 %874
        %876 = vadd.xlane.f32.xlu0 %v766
        %v877 = vpop.xlane.xlu0 %876
        %878 = vadd.xlane.f32.xlu0 %v767
        %v879 = vpop.xlane.xlu0 %878
        %880 = vadd.xlane.f32.xlu0 %v768
        %v881 = vpop.xlane.xlu0 %880
        %882 = vadd.xlane.f32.xlu0 %v769
        %v883 = vpop.xlane.xlu0 %882
        %884 = vadd.xlane.f32.xlu0 %v770
        %v885 = vpop.xlane.xlu0 %884
        %886 = vadd.xlane.f32.xlu0 %v771
        %v887 = vpop.xlane.xlu0 %886
        %888 = vadd.xlane.f32.xlu0 %v772
        %v889 = vpop.xlane.xlu0 %888
        %890 = vadd.xlane.f32.xlu0 %v773
        %v891 = vpop.xlane.xlu0 %890
        %892 = vadd.xlane.f32.xlu0 %v774
        %v893 = vpop.xlane.xlu0 %892
        %894 = vadd.xlane.f32.xlu0 %v775
        %v895 = vpop.xlane.xlu0 %894
        %896 = vadd.xlane.f32.xlu0 %v776
        %v897 = vpop.xlane.xlu0 %896
        %898 = vadd.xlane.f32.xlu0 %v777
        %v899 = vpop.xlane.xlu0 %898
        %900 = vadd.xlane.f32.xlu0 %v778
        %v901 = vpop.xlane.xlu0 %900
        %902 = vadd.xlane.f32.xlu0 %v779
        %v903 = vpop.xlane.xlu0 %902
        %904 = vadd.xlane.f32.xlu0 %v780
        %v905 = vpop.xlane.xlu0 %904
        %906 = vadd.xlane.f32.xlu0 %v781
        %v907 = vpop.xlane.xlu0 %906
        %908 = vadd.xlane.f32.xlu0 %v782
        %v909 = vpop.xlane.xlu0 %908
        %910 = vadd.xlane.f32.xlu0 %v783
        %v911 = vpop.xlane.xlu0 %910
        %v912 = vmul.f32 %v785, 0.007874016
        %v913 = vmul.f32 %v787, 0.007874016
        %v914 = vmul.f32 %v789, 0.007874016
        %v915 = vmul.f32 %v791, 0.007874016
        %v916 = vmul.f32 %v793, 0.007874016
        %v917 = vmul.f32 %v795, 0.007874016
        %v918 = vmul.f32 %v797, 0.007874016
        %v919 = vmul.f32 %v799, 0.007874016
        %v920 = vmul.f32 %v801, 0.007874016
        %v921 = vmul.f32 %v803, 0.007874016
        %v922 = vmul.f32 %v805, 0.007874016
        %v923 = vmul.f32 %v807, 0.007874016
        %v924 = vmul.f32 %v809, 0.007874016
        %v925 = vmul.f32 %v811, 0.007874016
        %v926 = vmul.f32 %v813, 0.007874016
        %v927 = vmul.f32 %v815, 0.007874016
        %v928 = vmul.f32 %v817, 0.007874016
        %v929 = vmul.f32 %v819, 0.007874016
        %v930 = vmul.f32 %v821, 0.007874016
        %v931 = vmul.f32 %v823, 0.007874016
        %v932 = vmul.f32 %v825, 0.007874016
        %v933 = vmul.f32 %v827, 0.007874016
        %v934 = vmul.f32 %v829, 0.007874016
        %v935 = vmul.f32 %v831, 0.007874016
        %v936 = vmul.f32 %v833, 0.007874016
        %v937 = vmul.f32 %v835, 0.007874016
        %v938 = vmul.f32 %v837, 0.007874016
        %v939 = vmul.f32 %v839, 0.007874016
        %v940 = vmul.f32 %v841, 0.007874016
        %v941 = vmul.f32 %v843, 0.007874016
        %v942 = vmul.f32 %v845, 0.007874016
        %v943 = vmul.f32 %v847, 0.007874016
        %v944 = vmul.f32 %v849, 0.007874016
        %v945 = vmul.f32 %v851, 0.007874016
        %v946 = vmul.f32 %v853, 0.007874016
        %v947 = vmul.f32 %v855, 0.007874016
        %v948 = vmul.f32 %v857, 0.007874016
        %v949 = vmul.f32 %v859, 0.007874016
        %v950 = vmul.f32 %v861, 0.007874016
        %v951 = vmul.f32 %v863, 0.007874016
        %v952 = vmul.f32 %v865, 0.007874016
        %v953 = vmul.f32 %v867, 0.007874016
        %v954 = vmul.f32 %v869, 0.007874016
        %v955 = vmul.f32 %v871, 0.007874016
        %v956 = vmul.f32 %v873, 0.007874016
        %v957 = vmul.f32 %v875, 0.007874016
        %v958 = vmul.f32 %v877, 0.007874016
        %v959 = vmul.f32 %v879, 0.007874016
        %v960 = vmul.f32 %v881, 0.007874016
        %v961 = vmul.f32 %v883, 0.007874016
        %v962 = vmul.f32 %v885, 0.007874016
        %v963 = vmul.f32 %v887, 0.007874016
        %v964 = vmul.f32 %v889, 0.007874016
        %v965 = vmul.f32 %v891, 0.007874016
        %v966 = vmul.f32 %v893, 0.007874016
        %v967 = vmul.f32 %v895, 0.007874016
        %v968 = vmul.f32 %v897, 0.007874016
        %v969 = vmul.f32 %v899, 0.007874016
        %v970 = vmul.f32 %v901, 0.007874016
        %v971 = vmul.f32 %v903, 0.007874016
        %v972 = vmul.f32 %v905, 0.007874016
        %v973 = vmul.f32 %v907, 0.007874016
        %v974 = vmul.f32 %v909, 0.007874016
        %v975 = vmul.f32 %v911, 0.007874016
        %v976 = vrsqrt.pop %v912
        %v977 = vmul.f32 %v976, %v912
        %v978 = vmul.f32 %v977, %v976
        %v979 = vmul.f32 0.5, %v978
        %v980 = vsub.f32 1.5, %v979
        %v981 = vmul.f32 %v976, %v980
        %v982 = vmul.f32 %v912, %v981
        %vm983 = vcmp.eq.f32.partialorder %v912, inf
        %v984 = vsel %vm983, %v912, %v982
        %vm985 = vcmp.eq.f32.partialorder %v912, 0.0
        %v986 = vand.u32 %v912, 2147483648
        %v987 = vsel %vm985, %v986, %v984
        %v988 = vrsqrt.pop %v913
        %v989 = vmul.f32 %v988, %v913
        %v990 = vmul.f32 %v989, %v988
        %v991 = vmul.f32 0.5, %v990
        %v992 = vsub.f32 1.5, %v991
        %v993 = vmul.f32 %v988, %v992
        %v994 = vmul.f32 %v913, %v993
        %vm995 = vcmp.eq.f32.partialorder %v913, inf
        %v996 = vsel %vm995, %v913, %v994
        %vm997 = vcmp.eq.f32.partialorder %v913, 0.0
        %v998 = vand.u32 %v913, 2147483648
        %v999 = vsel %vm997, %v998, %v996
        %v1000 = vrsqrt.pop %v914
        %v1001 = vmul.f32 %v1000, %v914
        %v1002 = vmul.f32 %v1001, %v1000
        %v1003 = vmul.f32 0.5, %v1002
        %v1004 = vsub.f32 1.5, %v1003
        %v1005 = vmul.f32 %v1000, %v1004
        %v1006 = vmul.f32 %v914, %v1005
        %vm1007 = vcmp.eq.f32.partialorder %v914, inf
        %v1008 = vsel %vm1007, %v914, %v1006
        %vm1009 = vcmp.eq.f32.partialorder %v914, 0.0
        %v1010 = vand.u32 %v914, 2147483648
        %v1011 = vsel %vm1009, %v1010, %v1008
        %v1012 = vrsqrt.pop %v915
        %v1013 = vmul.f32 %v1012, %v915
        %v1014 = vmul.f32 %v1013, %v1012
        %v1015 = vmul.f32 0.5, %v1014
        %v1016 = vsub.f32 1.5, %v1015
        %v1017 = vmul.f32 %v1012, %v1016
        %v1018 = vmul.f32 %v915, %v1017
        %vm1019 = vcmp.eq.f32.partialorder %v915, inf
        %v1020 = vsel %vm1019, %v915, %v1018
        %vm1021 = vcmp.eq.f32.partialorder %v915, 0.0
        %v1022 = vand.u32 %v915, 2147483648
        %v1023 = vsel %vm1021, %v1022, %v1020
        %v1024 = vrsqrt.pop %v916
        %v1025 = vmul.f32 %v1024, %v916
        %v1026 = vmul.f32 %v1025, %v1024
        %v1027 = vmul.f32 0.5, %v1026
        %v1028 = vsub.f32 1.5, %v1027
        %v1029 = vmul.f32 %v1024, %v1028
        %v1030 = vmul.f32 %v916, %v1029
        %vm1031 = vcmp.eq.f32.partialorder %v916, inf
        %v1032 = vsel %vm1031, %v916, %v1030
        %vm1033 = vcmp.eq.f32.partialorder %v916, 0.0
        %v1034 = vand.u32 %v916, 2147483648
        %v1035 = vsel %vm1033, %v1034, %v1032
        %v1036 = vrsqrt.pop %v917
        %v1037 = vmul.f32 %v1036, %v917
        %v1038 = vmul.f32 %v1037, %v1036
        %v1039 = vmul.f32 0.5, %v1038
        %v1040 = vsub.f32 1.5, %v1039
        %v1041 = vmul.f32 %v1036, %v1040
        %v1042 = vmul.f32 %v917, %v1041
        %vm1043 = vcmp.eq.f32.partialorder %v917, inf
        %v1044 = vsel %vm1043, %v917, %v1042
        %vm1045 = vcmp.eq.f32.partialorder %v917, 0.0
        %v1046 = vand.u32 %v917, 2147483648
        %v1047 = vsel %vm1045, %v1046, %v1044
        %v1048 = vrsqrt.pop %v918
        %v1049 = vmul.f32 %v1048, %v918
        %v1050 = vmul.f32 %v1049, %v1048
        %v1051 = vmul.f32 0.5, %v1050
        %v1052 = vsub.f32 1.5, %v1051
        %v1053 = vmul.f32 %v1048, %v1052
        %v1054 = vmul.f32 %v918, %v1053
        %vm1055 = vcmp.eq.f32.partialorder %v918, inf
        %v1056 = vsel %vm1055, %v918, %v1054
        %vm1057 = vcmp.eq.f32.partialorder %v918, 0.0
        %v1058 = vand.u32 %v918, 2147483648
        %v1059 = vsel %vm1057, %v1058, %v1056
        %v1060 = vrsqrt.pop %v919
        %v1061 = vmul.f32 %v1060, %v919
        %v1062 = vmul.f32 %v1061, %v1060
        %v1063 = vmul.f32 0.5, %v1062
        %v1064 = vsub.f32 1.5, %v1063
        %v1065 = vmul.f32 %v1060, %v1064
        %v1066 = vmul.f32 %v919, %v1065
        %vm1067 = vcmp.eq.f32.partialorder %v919, inf
        %v1068 = vsel %vm1067, %v919, %v1066
        %vm1069 = vcmp.eq.f32.partialorder %v919, 0.0
        %v1070 = vand.u32 %v919, 2147483648
        %v1071 = vsel %vm1069, %v1070, %v1068
        %v1072 = vrsqrt.pop %v920
        %v1073 = vmul.f32 %v1072, %v920
        %v1074 = vmul.f32 %v1073, %v1072
        %v1075 = vmul.f32 0.5, %v1074
        %v1076 = vsub.f32 1.5, %v1075
        %v1077 = vmul.f32 %v1072, %v1076
        %v1078 = vmul.f32 %v920, %v1077
        %vm1079 = vcmp.eq.f32.partialorder %v920, inf
        %v1080 = vsel %vm1079, %v920, %v1078
        %vm1081 = vcmp.eq.f32.partialorder %v920, 0.0
        %v1082 = vand.u32 %v920, 2147483648
        %v1083 = vsel %vm1081, %v1082, %v1080
        %v1084 = vrsqrt.pop %v921
        %v1085 = vmul.f32 %v1084, %v921
        %v1086 = vmul.f32 %v1085, %v1084
        %v1087 = vmul.f32 0.5, %v1086
        %v1088 = vsub.f32 1.5, %v1087
        %v1089 = vmul.f32 %v1084, %v1088
        %v1090 = vmul.f32 %v921, %v1089
        %vm1091 = vcmp.eq.f32.partialorder %v921, inf
        %v1092 = vsel %vm1091, %v921, %v1090
        %vm1093 = vcmp.eq.f32.partialorder %v921, 0.0
        %v1094 = vand.u32 %v921, 2147483648
        %v1095 = vsel %vm1093, %v1094, %v1092
        %v1096 = vrsqrt.pop %v922
        %v1097 = vmul.f32 %v1096, %v922
        %v1098 = vmul.f32 %v1097, %v1096
        %v1099 = vmul.f32 0.5, %v1098
        %v1100 = vsub.f32 1.5, %v1099
        %v1101 = vmul.f32 %v1096, %v1100
        %v1102 = vmul.f32 %v922, %v1101
        %vm1103 = vcmp.eq.f32.partialorder %v922, inf
        %v1104 = vsel %vm1103, %v922, %v1102
        %vm1105 = vcmp.eq.f32.partialorder %v922, 0.0
        %v1106 = vand.u32 %v922, 2147483648
        %v1107 = vsel %vm1105, %v1106, %v1104
        %v1108 = vrsqrt.pop %v923
        %v1109 = vmul.f32 %v1108, %v923
        %v1110 = vmul.f32 %v1109, %v1108
        %v1111 = vmul.f32 0.5, %v1110
        %v1112 = vsub.f32 1.5, %v1111
        %v1113 = vmul.f32 %v1108, %v1112
        %v1114 = vmul.f32 %v923, %v1113
        %vm1115 = vcmp.eq.f32.partialorder %v923, inf
        %v1116 = vsel %vm1115, %v923, %v1114
        %vm1117 = vcmp.eq.f32.partialorder %v923, 0.0
        %v1118 = vand.u32 %v923, 2147483648
        %v1119 = vsel %vm1117, %v1118, %v1116
        %v1120 = vrsqrt.pop %v924
        %v1121 = vmul.f32 %v1120, %v924
        %v1122 = vmul.f32 %v1121, %v1120
        %v1123 = vmul.f32 0.5, %v1122
        %v1124 = vsub.f32 1.5, %v1123
        %v1125 = vmul.f32 %v1120, %v1124
        %v1126 = vmul.f32 %v924, %v1125
        %vm1127 = vcmp.eq.f32.partialorder %v924, inf
        %v1128 = vsel %vm1127, %v924, %v1126
        %vm1129 = vcmp.eq.f32.partialorder %v924, 0.0
        %v1130 = vand.u32 %v924, 2147483648
        %v1131 = vsel %vm1129, %v1130, %v1128
        %v1132 = vrsqrt.pop %v925
        %v1133 = vmul.f32 %v1132, %v925
        %v1134 = vmul.f32 %v1133, %v1132
        %v1135 = vmul.f32 0.5, %v1134
        %v1136 = vsub.f32 1.5, %v1135
        %v1137 = vmul.f32 %v1132, %v1136
        %v1138 = vmul.f32 %v925, %v1137
        %vm1139 = vcmp.eq.f32.partialorder %v925, inf
        %v1140 = vsel %vm1139, %v925, %v1138
        %vm1141 = vcmp.eq.f32.partialorder %v925, 0.0
        %v1142 = vand.u32 %v925, 2147483648
        %v1143 = vsel %vm1141, %v1142, %v1140
        %v1144 = vrsqrt.pop %v926
        %v1145 = vmul.f32 %v1144, %v926
        %v1146 = vmul.f32 %v1145, %v1144
        %v1147 = vmul.f32 0.5, %v1146
        %v1148 = vsub.f32 1.5, %v1147
        %v1149 = vmul.f32 %v1144, %v1148
        %v1150 = vmul.f32 %v926, %v1149
        %vm1151 = vcmp.eq.f32.partialorder %v926, inf
        %v1152 = vsel %vm1151, %v926, %v1150
        %vm1153 = vcmp.eq.f32.partialorder %v926, 0.0
        %v1154 = vand.u32 %v926, 2147483648
        %v1155 = vsel %vm1153, %v1154, %v1152
        %v1156 = vrsqrt.pop %v927
        %v1157 = vmul.f32 %v1156, %v927
        %v1158 = vmul.f32 %v1157, %v1156
        %v1159 = vmul.f32 0.5, %v1158
        %v1160 = vsub.f32 1.5, %v1159
        %v1161 = vmul.f32 %v1156, %v1160
        %v1162 = vmul.f32 %v927, %v1161
        %vm1163 = vcmp.eq.f32.partialorder %v927, inf
        %v1164 = vsel %vm1163, %v927, %v1162
        %vm1165 = vcmp.eq.f32.partialorder %v927, 0.0
        %v1166 = vand.u32 %v927, 2147483648
        %v1167 = vsel %vm1165, %v1166, %v1164
        %v1168 = vrsqrt.pop %v928
        %v1169 = vmul.f32 %v1168, %v928
        %v1170 = vmul.f32 %v1169, %v1168
        %v1171 = vmul.f32 0.5, %v1170
        %v1172 = vsub.f32 1.5, %v1171
        %v1173 = vmul.f32 %v1168, %v1172
        %v1174 = vmul.f32 %v928, %v1173
        %vm1175 = vcmp.eq.f32.partialorder %v928, inf
        %v1176 = vsel %vm1175, %v928, %v1174
        %vm1177 = vcmp.eq.f32.partialorder %v928, 0.0
        %v1178 = vand.u32 %v928, 2147483648
        %v1179 = vsel %vm1177, %v1178, %v1176
        %v1180 = vrsqrt.pop %v929
        %v1181 = vmul.f32 %v1180, %v929
        %v1182 = vmul.f32 %v1181, %v1180
        %v1183 = vmul.f32 0.5, %v1182
        %v1184 = vsub.f32 1.5, %v1183
        %v1185 = vmul.f32 %v1180, %v1184
        %v1186 = vmul.f32 %v929, %v1185
        %vm1187 = vcmp.eq.f32.partialorder %v929, inf
        %v1188 = vsel %vm1187, %v929, %v1186
        %vm1189 = vcmp.eq.f32.partialorder %v929, 0.0
        %v1190 = vand.u32 %v929, 2147483648
        %v1191 = vsel %vm1189, %v1190, %v1188
        %v1192 = vrsqrt.pop %v930
        %v1193 = vmul.f32 %v1192, %v930
        %v1194 = vmul.f32 %v1193, %v1192
        %v1195 = vmul.f32 0.5, %v1194
        %v1196 = vsub.f32 1.5, %v1195
        %v1197 = vmul.f32 %v1192, %v1196
        %v1198 = vmul.f32 %v930, %v1197
        %vm1199 = vcmp.eq.f32.partialorder %v930, inf
        %v1200 = vsel %vm1199, %v930, %v1198
        %vm1201 = vcmp.eq.f32.partialorder %v930, 0.0
        %v1202 = vand.u32 %v930, 2147483648
        %v1203 = vsel %vm1201, %v1202, %v1200
        %v1204 = vrsqrt.pop %v931
        %v1205 = vmul.f32 %v1204, %v931
        %v1206 = vmul.f32 %v1205, %v1204
        %v1207 = vmul.f32 0.5, %v1206
        %v1208 = vsub.f32 1.5, %v1207
        %v1209 = vmul.f32 %v1204, %v1208
        %v1210 = vmul.f32 %v931, %v1209
        %vm1211 = vcmp.eq.f32.partialorder %v931, inf
        %v1212 = vsel %vm1211, %v931, %v1210
        %vm1213 = vcmp.eq.f32.partialorder %v931, 0.0
        %v1214 = vand.u32 %v931, 2147483648
        %v1215 = vsel %vm1213, %v1214, %v1212
        %v1216 = vrsqrt.pop %v932
        %v1217 = vmul.f32 %v1216, %v932
        %v1218 = vmul.f32 %v1217, %v1216
        %v1219 = vmul.f32 0.5, %v1218
        %v1220 = vsub.f32 1.5, %v1219
        %v1221 = vmul.f32 %v1216, %v1220
        %v1222 = vmul.f32 %v932, %v1221
        %vm1223 = vcmp.eq.f32.partialorder %v932, inf
        %v1224 = vsel %vm1223, %v932, %v1222
        %vm1225 = vcmp.eq.f32.partialorder %v932, 0.0
        %v1226 = vand.u32 %v932, 2147483648
        %v1227 = vsel %vm1225, %v1226, %v1224
        %v1228 = vrsqrt.pop %v933
        %v1229 = vmul.f32 %v1228, %v933
        %v1230 = vmul.f32 %v1229, %v1228
        %v1231 = vmul.f32 0.5, %v1230
        %v1232 = vsub.f32 1.5, %v1231
        %v1233 = vmul.f32 %v1228, %v1232
        %v1234 = vmul.f32 %v933, %v1233
        %vm1235 = vcmp.eq.f32.partialorder %v933, inf
        %v1236 = vsel %vm1235, %v933, %v1234
        %vm1237 = vcmp.eq.f32.partialorder %v933, 0.0
        %v1238 = vand.u32 %v933, 2147483648
        %v1239 = vsel %vm1237, %v1238, %v1236
        %v1240 = vrsqrt.pop %v934
        %v1241 = vmul.f32 %v1240, %v934
        %v1242 = vmul.f32 %v1241, %v1240
        %v1243 = vmul.f32 0.5, %v1242
        %v1244 = vsub.f32 1.5, %v1243
        %v1245 = vmul.f32 %v1240, %v1244
        %v1246 = vmul.f32 %v934, %v1245
        %vm1247 = vcmp.eq.f32.partialorder %v934, inf
        %v1248 = vsel %vm1247, %v934, %v1246
        %vm1249 = vcmp.eq.f32.partialorder %v934, 0.0
        %v1250 = vand.u32 %v934, 2147483648
        %v1251 = vsel %vm1249, %v1250, %v1248
        %v1252 = vrsqrt.pop %v935
        %v1253 = vmul.f32 %v1252, %v935
        %v1254 = vmul.f32 %v1253, %v1252
        %v1255 = vmul.f32 0.5, %v1254
        %v1256 = vsub.f32 1.5, %v1255
        %v1257 = vmul.f32 %v1252, %v1256
        %v1258 = vmul.f32 %v935, %v1257
        %vm1259 = vcmp.eq.f32.partialorder %v935, inf
        %v1260 = vsel %vm1259, %v935, %v1258
        %vm1261 = vcmp.eq.f32.partialorder %v935, 0.0
        %v1262 = vand.u32 %v935, 2147483648
        %v1263 = vsel %vm1261, %v1262, %v1260
        %v1264 = vrsqrt.pop %v936
        %v1265 = vmul.f32 %v1264, %v936
        %v1266 = vmul.f32 %v1265, %v1264
        %v1267 = vmul.f32 0.5, %v1266
        %v1268 = vsub.f32 1.5, %v1267
        %v1269 = vmul.f32 %v1264, %v1268
        %v1270 = vmul.f32 %v936, %v1269
        %vm1271 = vcmp.eq.f32.partialorder %v936, inf
        %v1272 = vsel %vm1271, %v936, %v1270
        %vm1273 = vcmp.eq.f32.partialorder %v936, 0.0
        %v1274 = vand.u32 %v936, 2147483648
        %v1275 = vsel %vm1273, %v1274, %v1272
        %v1276 = vrsqrt.pop %v937
        %v1277 = vmul.f32 %v1276, %v937
        %v1278 = vmul.f32 %v1277, %v1276
        %v1279 = vmul.f32 0.5, %v1278
        %v1280 = vsub.f32 1.5, %v1279
        %v1281 = vmul.f32 %v1276, %v1280
        %v1282 = vmul.f32 %v937, %v1281
        %vm1283 = vcmp.eq.f32.partialorder %v937, inf
        %v1284 = vsel %vm1283, %v937, %v1282
        %vm1285 = vcmp.eq.f32.partialorder %v937, 0.0
        %v1286 = vand.u32 %v937, 2147483648
        %v1287 = vsel %vm1285, %v1286, %v1284
        %v1288 = vrsqrt.pop %v938
        %v1289 = vmul.f32 %v1288, %v938
        %v1290 = vmul.f32 %v1289, %v1288
        %v1291 = vmul.f32 0.5, %v1290
        %v1292 = vsub.f32 1.5, %v1291
        %v1293 = vmul.f32 %v1288, %v1292
        %v1294 = vmul.f32 %v938, %v1293
        %vm1295 = vcmp.eq.f32.partialorder %v938, inf
        %v1296 = vsel %vm1295, %v938, %v1294
        %vm1297 = vcmp.eq.f32.partialorder %v938, 0.0
        %v1298 = vand.u32 %v938, 2147483648
        %v1299 = vsel %vm1297, %v1298, %v1296
        %v1300 = vrsqrt.pop %v939
        %v1301 = vmul.f32 %v1300, %v939
        %v1302 = vmul.f32 %v1301, %v1300
        %v1303 = vmul.f32 0.5, %v1302
        %v1304 = vsub.f32 1.5, %v1303
        %v1305 = vmul.f32 %v1300, %v1304
        %v1306 = vmul.f32 %v939, %v1305
        %vm1307 = vcmp.eq.f32.partialorder %v939, inf
        %v1308 = vsel %vm1307, %v939, %v1306
        %vm1309 = vcmp.eq.f32.partialorder %v939, 0.0
        %v1310 = vand.u32 %v939, 2147483648
        %v1311 = vsel %vm1309, %v1310, %v1308
        %v1312 = vrsqrt.pop %v940
        %v1313 = vmul.f32 %v1312, %v940
        %v1314 = vmul.f32 %v1313, %v1312
        %v1315 = vmul.f32 0.5, %v1314
        %v1316 = vsub.f32 1.5, %v1315
        %v1317 = vmul.f32 %v1312, %v1316
        %v1318 = vmul.f32 %v940, %v1317
        %vm1319 = vcmp.eq.f32.partialorder %v940, inf
        %v1320 = vsel %vm1319, %v940, %v1318
        %vm1321 = vcmp.eq.f32.partialorder %v940, 0.0
        %v1322 = vand.u32 %v940, 2147483648
        %v1323 = vsel %vm1321, %v1322, %v1320
        %v1324 = vrsqrt.pop %v941
        %v1325 = vmul.f32 %v1324, %v941
        %v1326 = vmul.f32 %v1325, %v1324
        %v1327 = vmul.f32 0.5, %v1326
        %v1328 = vsub.f32 1.5, %v1327
        %v1329 = vmul.f32 %v1324, %v1328
        %v1330 = vmul.f32 %v941, %v1329
        %vm1331 = vcmp.eq.f32.partialorder %v941, inf
        %v1332 = vsel %vm1331, %v941, %v1330
        %vm1333 = vcmp.eq.f32.partialorder %v941, 0.0
        %v1334 = vand.u32 %v941, 2147483648
        %v1335 = vsel %vm1333, %v1334, %v1332
        %v1336 = vrsqrt.pop %v942
        %v1337 = vmul.f32 %v1336, %v942
        %v1338 = vmul.f32 %v1337, %v1336
        %v1339 = vmul.f32 0.5, %v1338
        %v1340 = vsub.f32 1.5, %v1339
        %v1341 = vmul.f32 %v1336, %v1340
        %v1342 = vmul.f32 %v942, %v1341
        %vm1343 = vcmp.eq.f32.partialorder %v942, inf
        %v1344 = vsel %vm1343, %v942, %v1342
        %vm1345 = vcmp.eq.f32.partialorder %v942, 0.0
        %v1346 = vand.u32 %v942, 2147483648
        %v1347 = vsel %vm1345, %v1346, %v1344
        %v1348 = vrsqrt.pop %v943
        %v1349 = vmul.f32 %v1348, %v943
        %v1350 = vmul.f32 %v1349, %v1348
        %v1351 = vmul.f32 0.5, %v1350
        %v1352 = vsub.f32 1.5, %v1351
        %v1353 = vmul.f32 %v1348, %v1352
        %v1354 = vmul.f32 %v943, %v1353
        %vm1355 = vcmp.eq.f32.partialorder %v943, inf
        %v1356 = vsel %vm1355, %v943, %v1354
        %vm1357 = vcmp.eq.f32.partialorder %v943, 0.0
        %v1358 = vand.u32 %v943, 2147483648
        %v1359 = vsel %vm1357, %v1358, %v1356
        %v1360 = vrsqrt.pop %v944
        %v1361 = vmul.f32 %v1360, %v944
        %v1362 = vmul.f32 %v1361, %v1360
        %v1363 = vmul.f32 0.5, %v1362
        %v1364 = vsub.f32 1.5, %v1363
        %v1365 = vmul.f32 %v1360, %v1364
        %v1366 = vmul.f32 %v944, %v1365
        %vm1367 = vcmp.eq.f32.partialorder %v944, inf
        %v1368 = vsel %vm1367, %v944, %v1366
        %vm1369 = vcmp.eq.f32.partialorder %v944, 0.0
        %v1370 = vand.u32 %v944, 2147483648
        %v1371 = vsel %vm1369, %v1370, %v1368
        %v1372 = vrsqrt.pop %v945
        %v1373 = vmul.f32 %v1372, %v945
        %v1374 = vmul.f32 %v1373, %v1372
        %v1375 = vmul.f32 0.5, %v1374
        %v1376 = vsub.f32 1.5, %v1375
        %v1377 = vmul.f32 %v1372, %v1376
        %v1378 = vmul.f32 %v945, %v1377
        %vm1379 = vcmp.eq.f32.partialorder %v945, inf
        %v1380 = vsel %vm1379, %v945, %v1378
        %vm1381 = vcmp.eq.f32.partialorder %v945, 0.0
        %v1382 = vand.u32 %v945, 2147483648
        %v1383 = vsel %vm1381, %v1382, %v1380
        %v1384 = vrsqrt.pop %v946
        %v1385 = vmul.f32 %v1384, %v946
        %v1386 = vmul.f32 %v1385, %v1384
        %v1387 = vmul.f32 0.5, %v1386
        %v1388 = vsub.f32 1.5, %v1387
        %v1389 = vmul.f32 %v1384, %v1388
        %v1390 = vmul.f32 %v946, %v1389
        %vm1391 = vcmp.eq.f32.partialorder %v946, inf
        %v1392 = vsel %vm1391, %v946, %v1390
        %vm1393 = vcmp.eq.f32.partialorder %v946, 0.0
        %v1394 = vand.u32 %v946, 2147483648
        %v1395 = vsel %vm1393, %v1394, %v1392
        %v1396 = vrsqrt.pop %v947
        %v1397 = vmul.f32 %v1396, %v947
        %v1398 = vmul.f32 %v1397, %v1396
        %v1399 = vmul.f32 0.5, %v1398
        %v1400 = vsub.f32 1.5, %v1399
        %v1401 = vmul.f32 %v1396, %v1400
        %v1402 = vmul.f32 %v947, %v1401
        %vm1403 = vcmp.eq.f32.partialorder %v947, inf
        %v1404 = vsel %vm1403, %v947, %v1402
        %vm1405 = vcmp.eq.f32.partialorder %v947, 0.0
        %v1406 = vand.u32 %v947, 2147483648
        %v1407 = vsel %vm1405, %v1406, %v1404
        %v1408 = vrsqrt.pop %v948
        %v1409 = vmul.f32 %v1408, %v948
        %v1410 = vmul.f32 %v1409, %v1408
        %v1411 = vmul.f32 0.5, %v1410
        %v1412 = vsub.f32 1.5, %v1411
        %v1413 = vmul.f32 %v1408, %v1412
        %v1414 = vmul.f32 %v948, %v1413
        %vm1415 = vcmp.eq.f32.partialorder %v948, inf
        %v1416 = vsel %vm1415, %v948, %v1414
        %vm1417 = vcmp.eq.f32.partialorder %v948, 0.0
        %v1418 = vand.u32 %v948, 2147483648
        %v1419 = vsel %vm1417, %v1418, %v1416
        %v1420 = vrsqrt.pop %v949
        %v1421 = vmul.f32 %v1420, %v949
        %v1422 = vmul.f32 %v1421, %v1420
        %v1423 = vmul.f32 0.5, %v1422
        %v1424 = vsub.f32 1.5, %v1423
        %v1425 = vmul.f32 %v1420, %v1424
        %v1426 = vmul.f32 %v949, %v1425
        %vm1427 = vcmp.eq.f32.partialorder %v949, inf
        %v1428 = vsel %vm1427, %v949, %v1426
        %vm1429 = vcmp.eq.f32.partialorder %v949, 0.0
        %v1430 = vand.u32 %v949, 2147483648
        %v1431 = vsel %vm1429, %v1430, %v1428
        %v1432 = vrsqrt.pop %v950
        %v1433 = vmul.f32 %v1432, %v950
        %v1434 = vmul.f32 %v1433, %v1432
        %v1435 = vmul.f32 0.5, %v1434
        %v1436 = vsub.f32 1.5, %v1435
        %v1437 = vmul.f32 %v1432, %v1436
        %v1438 = vmul.f32 %v950, %v1437
        %vm1439 = vcmp.eq.f32.partialorder %v950, inf
        %v1440 = vsel %vm1439, %v950, %v1438
        %vm1441 = vcmp.eq.f32.partialorder %v950, 0.0
        %v1442 = vand.u32 %v950, 2147483648
        %v1443 = vsel %vm1441, %v1442, %v1440
        %v1444 = vrsqrt.pop %v951
        %v1445 = vmul.f32 %v1444, %v951
        %v1446 = vmul.f32 %v1445, %v1444
        %v1447 = vmul.f32 0.5, %v1446
        %v1448 = vsub.f32 1.5, %v1447
        %v1449 = vmul.f32 %v1444, %v1448
        %v1450 = vmul.f32 %v951, %v1449
        %vm1451 = vcmp.eq.f32.partialorder %v951, inf
        %v1452 = vsel %vm1451, %v951, %v1450
        %vm1453 = vcmp.eq.f32.partialorder %v951, 0.0
        %v1454 = vand.u32 %v951, 2147483648
        %v1455 = vsel %vm1453, %v1454, %v1452
        %v1456 = vrsqrt.pop %v952
        %v1457 = vmul.f32 %v1456, %v952
        %v1458 = vmul.f32 %v1457, %v1456
        %v1459 = vmul.f32 0.5, %v1458
        %v1460 = vsub.f32 1.5, %v1459
        %v1461 = vmul.f32 %v1456, %v1460
        %v1462 = vmul.f32 %v952, %v1461
        %vm1463 = vcmp.eq.f32.partialorder %v952, inf
        %v1464 = vsel %vm1463, %v952, %v1462
        %vm1465 = vcmp.eq.f32.partialorder %v952, 0.0
        %v1466 = vand.u32 %v952, 2147483648
        %v1467 = vsel %vm1465, %v1466, %v1464
        %v1468 = vrsqrt.pop %v953
        %v1469 = vmul.f32 %v1468, %v953
        %v1470 = vmul.f32 %v1469, %v1468
        %v1471 = vmul.f32 0.5, %v1470
        %v1472 = vsub.f32 1.5, %v1471
        %v1473 = vmul.f32 %v1468, %v1472
        %v1474 = vmul.f32 %v953, %v1473
        %vm1475 = vcmp.eq.f32.partialorder %v953, inf
        %v1476 = vsel %vm1475, %v953, %v1474
        %vm1477 = vcmp.eq.f32.partialorder %v953, 0.0
        %v1478 = vand.u32 %v953, 2147483648
        %v1479 = vsel %vm1477, %v1478, %v1476
        %v1480 = vrsqrt.pop %v954
        %v1481 = vmul.f32 %v1480, %v954
        %v1482 = vmul.f32 %v1481, %v1480
        %v1483 = vmul.f32 0.5, %v1482
        %v1484 = vsub.f32 1.5, %v1483
        %v1485 = vmul.f32 %v1480, %v1484
        %v1486 = vmul.f32 %v954, %v1485
        %vm1487 = vcmp.eq.f32.partialorder %v954, inf
        %v1488 = vsel %vm1487, %v954, %v1486
        %vm1489 = vcmp.eq.f32.partialorder %v954, 0.0
        %v1490 = vand.u32 %v954, 2147483648
        %v1491 = vsel %vm1489, %v1490, %v1488
        %v1492 = vrsqrt.pop %v955
        %v1493 = vmul.f32 %v1492, %v955
        %v1494 = vmul.f32 %v1493, %v1492
        %v1495 = vmul.f32 0.5, %v1494
        %v1496 = vsub.f32 1.5, %v1495
        %v1497 = vmul.f32 %v1492, %v1496
        %v1498 = vmul.f32 %v955, %v1497
        %vm1499 = vcmp.eq.f32.partialorder %v955, inf
        %v1500 = vsel %vm1499, %v955, %v1498
        %vm1501 = vcmp.eq.f32.partialorder %v955, 0.0
        %v1502 = vand.u32 %v955, 2147483648
        %v1503 = vsel %vm1501, %v1502, %v1500
        %v1504 = vrsqrt.pop %v956
        %v1505 = vmul.f32 %v1504, %v956
        %v1506 = vmul.f32 %v1505, %v1504
        %v1507 = vmul.f32 0.5, %v1506
        %v1508 = vsub.f32 1.5, %v1507
        %v1509 = vmul.f32 %v1504, %v1508
        %v1510 = vmul.f32 %v956, %v1509
        %vm1511 = vcmp.eq.f32.partialorder %v956, inf
        %v1512 = vsel %vm1511, %v956, %v1510
        %vm1513 = vcmp.eq.f32.partialorder %v956, 0.0
        %v1514 = vand.u32 %v956, 2147483648
        %v1515 = vsel %vm1513, %v1514, %v1512
        %v1516 = vrsqrt.pop %v957
        %v1517 = vmul.f32 %v1516, %v957
        %v1518 = vmul.f32 %v1517, %v1516
        %v1519 = vmul.f32 0.5, %v1518
        %v1520 = vsub.f32 1.5, %v1519
        %v1521 = vmul.f32 %v1516, %v1520
        %v1522 = vmul.f32 %v957, %v1521
        %vm1523 = vcmp.eq.f32.partialorder %v957, inf
        %v1524 = vsel %vm1523, %v957, %v1522
        %vm1525 = vcmp.eq.f32.partialorder %v957, 0.0
        %v1526 = vand.u32 %v957, 2147483648
        %v1527 = vsel %vm1525, %v1526, %v1524
        %v1528 = vrsqrt.pop %v958
        %v1529 = vmul.f32 %v1528, %v958
        %v1530 = vmul.f32 %v1529, %v1528
        %v1531 = vmul.f32 0.5, %v1530
        %v1532 = vsub.f32 1.5, %v1531
        %v1533 = vmul.f32 %v1528, %v1532
        %v1534 = vmul.f32 %v958, %v1533
        %vm1535 = vcmp.eq.f32.partialorder %v958, inf
        %v1536 = vsel %vm1535, %v958, %v1534
        %vm1537 = vcmp.eq.f32.partialorder %v958, 0.0
        %v1538 = vand.u32 %v958, 2147483648
        %v1539 = vsel %vm1537, %v1538, %v1536
        %v1540 = vrsqrt.pop %v959
        %v1541 = vmul.f32 %v1540, %v959
        %v1542 = vmul.f32 %v1541, %v1540
        %v1543 = vmul.f32 0.5, %v1542
        %v1544 = vsub.f32 1.5, %v1543
        %v1545 = vmul.f32 %v1540, %v1544
        %v1546 = vmul.f32 %v959, %v1545
        %vm1547 = vcmp.eq.f32.partialorder %v959, inf
        %v1548 = vsel %vm1547, %v959, %v1546
        %vm1549 = vcmp.eq.f32.partialorder %v959, 0.0
        %v1550 = vand.u32 %v959, 2147483648
        %v1551 = vsel %vm1549, %v1550, %v1548
        %v1552 = vrsqrt.pop %v960
        %v1553 = vmul.f32 %v1552, %v960
        %v1554 = vmul.f32 %v1553, %v1552
        %v1555 = vmul.f32 0.5, %v1554
        %v1556 = vsub.f32 1.5, %v1555
        %v1557 = vmul.f32 %v1552, %v1556
        %v1558 = vmul.f32 %v960, %v1557
        %vm1559 = vcmp.eq.f32.partialorder %v960, inf
        %v1560 = vsel %vm1559, %v960, %v1558
        %vm1561 = vcmp.eq.f32.partialorder %v960, 0.0
        %v1562 = vand.u32 %v960, 2147483648
        %v1563 = vsel %vm1561, %v1562, %v1560
        %v1564 = vrsqrt.pop %v961
        %v1565 = vmul.f32 %v1564, %v961
        %v1566 = vmul.f32 %v1565, %v1564
        %v1567 = vmul.f32 0.5, %v1566
        %v1568 = vsub.f32 1.5, %v1567
        %v1569 = vmul.f32 %v1564, %v1568
        %v1570 = vmul.f32 %v961, %v1569
        %vm1571 = vcmp.eq.f32.partialorder %v961, inf
        %v1572 = vsel %vm1571, %v961, %v1570
        %vm1573 = vcmp.eq.f32.partialorder %v961, 0.0
        %v1574 = vand.u32 %v961, 2147483648
        %v1575 = vsel %vm1573, %v1574, %v1572
        %v1576 = vrsqrt.pop %v962
        %v1577 = vmul.f32 %v1576, %v962
        %v1578 = vmul.f32 %v1577, %v1576
        %v1579 = vmul.f32 0.5, %v1578
        %v1580 = vsub.f32 1.5, %v1579
        %v1581 = vmul.f32 %v1576, %v1580
        %v1582 = vmul.f32 %v962, %v1581
        %vm1583 = vcmp.eq.f32.partialorder %v962, inf
        %v1584 = vsel %vm1583, %v962, %v1582
        %vm1585 = vcmp.eq.f32.partialorder %v962, 0.0
        %v1586 = vand.u32 %v962, 2147483648
        %v1587 = vsel %vm1585, %v1586, %v1584
        %v1588 = vrsqrt.pop %v963
        %v1589 = vmul.f32 %v1588, %v963
        %v1590 = vmul.f32 %v1589, %v1588
        %v1591 = vmul.f32 0.5, %v1590
        %v1592 = vsub.f32 1.5, %v1591
        %v1593 = vmul.f32 %v1588, %v1592
        %v1594 = vmul.f32 %v963, %v1593
        %vm1595 = vcmp.eq.f32.partialorder %v963, inf
        %v1596 = vsel %vm1595, %v963, %v1594
        %vm1597 = vcmp.eq.f32.partialorder %v963, 0.0
        %v1598 = vand.u32 %v963, 2147483648
        %v1599 = vsel %vm1597, %v1598, %v1596
        %v1600 = vrsqrt.pop %v964
        %v1601 = vmul.f32 %v1600, %v964
        %v1602 = vmul.f32 %v1601, %v1600
        %v1603 = vmul.f32 0.5, %v1602
        %v1604 = vsub.f32 1.5, %v1603
        %v1605 = vmul.f32 %v1600, %v1604
        %v1606 = vmul.f32 %v964, %v1605
        %vm1607 = vcmp.eq.f32.partialorder %v964, inf
        %v1608 = vsel %vm1607, %v964, %v1606
        %vm1609 = vcmp.eq.f32.partialorder %v964, 0.0
        %v1610 = vand.u32 %v964, 2147483648
        %v1611 = vsel %vm1609, %v1610, %v1608
        %v1612 = vrsqrt.pop %v965
        %v1613 = vmul.f32 %v1612, %v965
        %v1614 = vmul.f32 %v1613, %v1612
        %v1615 = vmul.f32 0.5, %v1614
        %v1616 = vsub.f32 1.5, %v1615
        %v1617 = vmul.f32 %v1612, %v1616
        %v1618 = vmul.f32 %v965, %v1617
        %vm1619 = vcmp.eq.f32.partialorder %v965, inf
        %v1620 = vsel %vm1619, %v965, %v1618
        %vm1621 = vcmp.eq.f32.partialorder %v965, 0.0
        %v1622 = vand.u32 %v965, 2147483648
        %v1623 = vsel %vm1621, %v1622, %v1620
        %v1624 = vrsqrt.pop %v966
        %v1625 = vmul.f32 %v1624, %v966
        %v1626 = vmul.f32 %v1625, %v1624
        %v1627 = vmul.f32 0.5, %v1626
        %v1628 = vsub.f32 1.5, %v1627
        %v1629 = vmul.f32 %v1624, %v1628
        %v1630 = vmul.f32 %v966, %v1629
        %vm1631 = vcmp.eq.f32.partialorder %v966, inf
        %v1632 = vsel %vm1631, %v966, %v1630
        %vm1633 = vcmp.eq.f32.partialorder %v966, 0.0
        %v1634 = vand.u32 %v966, 2147483648
        %v1635 = vsel %vm1633, %v1634, %v1632
        %v1636 = vrsqrt.pop %v967
        %v1637 = vmul.f32 %v1636, %v967
        %v1638 = vmul.f32 %v1637, %v1636
        %v1639 = vmul.f32 0.5, %v1638
        %v1640 = vsub.f32 1.5, %v1639
        %v1641 = vmul.f32 %v1636, %v1640
        %v1642 = vmul.f32 %v967, %v1641
        %vm1643 = vcmp.eq.f32.partialorder %v967, inf
        %v1644 = vsel %vm1643, %v967, %v1642
        %vm1645 = vcmp.eq.f32.partialorder %v967, 0.0
        %v1646 = vand.u32 %v967, 2147483648
        %v1647 = vsel %vm1645, %v1646, %v1644
        %v1648 = vrsqrt.pop %v968
        %v1649 = vmul.f32 %v1648, %v968
        %v1650 = vmul.f32 %v1649, %v1648
        %v1651 = vmul.f32 0.5, %v1650
        %v1652 = vsub.f32 1.5, %v1651
        %v1653 = vmul.f32 %v1648, %v1652
        %v1654 = vmul.f32 %v968, %v1653
        %vm1655 = vcmp.eq.f32.partialorder %v968, inf
        %v1656 = vsel %vm1655, %v968, %v1654
        %vm1657 = vcmp.eq.f32.partialorder %v968, 0.0
        %v1658 = vand.u32 %v968, 2147483648
        %v1659 = vsel %vm1657, %v1658, %v1656
        %v1660 = vrsqrt.pop %v969
        %v1661 = vmul.f32 %v1660, %v969
        %v1662 = vmul.f32 %v1661, %v1660
        %v1663 = vmul.f32 0.5, %v1662
        %v1664 = vsub.f32 1.5, %v1663
        %v1665 = vmul.f32 %v1660, %v1664
        %v1666 = vmul.f32 %v969, %v1665
        %vm1667 = vcmp.eq.f32.partialorder %v969, inf
        %v1668 = vsel %vm1667, %v969, %v1666
        %vm1669 = vcmp.eq.f32.partialorder %v969, 0.0
        %v1670 = vand.u32 %v969, 2147483648
        %v1671 = vsel %vm1669, %v1670, %v1668
        %v1672 = vrsqrt.pop %v970
        %v1673 = vmul.f32 %v1672, %v970
        %v1674 = vmul.f32 %v1673, %v1672
        %v1675 = vmul.f32 0.5, %v1674
        %v1676 = vsub.f32 1.5, %v1675
        %v1677 = vmul.f32 %v1672, %v1676
        %v1678 = vmul.f32 %v970, %v1677
        %vm1679 = vcmp.eq.f32.partialorder %v970, inf
        %v1680 = vsel %vm1679, %v970, %v1678
        %vm1681 = vcmp.eq.f32.partialorder %v970, 0.0
        %v1682 = vand.u32 %v970, 2147483648
        %v1683 = vsel %vm1681, %v1682, %v1680
        %v1684 = vrsqrt.pop %v971
        %v1685 = vmul.f32 %v1684, %v971
        %v1686 = vmul.f32 %v1685, %v1684
        %v1687 = vmul.f32 0.5, %v1686
        %v1688 = vsub.f32 1.5, %v1687
        %v1689 = vmul.f32 %v1684, %v1688
        %v1690 = vmul.f32 %v971, %v1689
        %vm1691 = vcmp.eq.f32.partialorder %v971, inf
        %v1692 = vsel %vm1691, %v971, %v1690
        %vm1693 = vcmp.eq.f32.partialorder %v971, 0.0
        %v1694 = vand.u32 %v971, 2147483648
        %v1695 = vsel %vm1693, %v1694, %v1692
        %v1696 = vrsqrt.pop %v972
        %v1697 = vmul.f32 %v1696, %v972
        %v1698 = vmul.f32 %v1697, %v1696
        %v1699 = vmul.f32 0.5, %v1698
        %v1700 = vsub.f32 1.5, %v1699
        %v1701 = vmul.f32 %v1696, %v1700
        %v1702 = vmul.f32 %v972, %v1701
        %vm1703 = vcmp.eq.f32.partialorder %v972, inf
        %v1704 = vsel %vm1703, %v972, %v1702
        %vm1705 = vcmp.eq.f32.partialorder %v972, 0.0
        %v1706 = vand.u32 %v972, 2147483648
        %v1707 = vsel %vm1705, %v1706, %v1704
        %v1708 = vrsqrt.pop %v973
        %v1709 = vmul.f32 %v1708, %v973
        %v1710 = vmul.f32 %v1709, %v1708
        %v1711 = vmul.f32 0.5, %v1710
        %v1712 = vsub.f32 1.5, %v1711
        %v1713 = vmul.f32 %v1708, %v1712
        %v1714 = vmul.f32 %v973, %v1713
        %vm1715 = vcmp.eq.f32.partialorder %v973, inf
        %v1716 = vsel %vm1715, %v973, %v1714
        %vm1717 = vcmp.eq.f32.partialorder %v973, 0.0
        %v1718 = vand.u32 %v973, 2147483648
        %v1719 = vsel %vm1717, %v1718, %v1716
        %v1720 = vrsqrt.pop %v974
        %v1721 = vmul.f32 %v1720, %v974
        %v1722 = vmul.f32 %v1721, %v1720
        %v1723 = vmul.f32 0.5, %v1722
        %v1724 = vsub.f32 1.5, %v1723
        %v1725 = vmul.f32 %v1720, %v1724
        %v1726 = vmul.f32 %v974, %v1725
        %vm1727 = vcmp.eq.f32.partialorder %v974, inf
        %v1728 = vsel %vm1727, %v974, %v1726
        %vm1729 = vcmp.eq.f32.partialorder %v974, 0.0
        %v1730 = vand.u32 %v974, 2147483648
        %v1731 = vsel %vm1729, %v1730, %v1728
        %v1732 = vrsqrt.pop %v975
        %v1733 = vmul.f32 %v1732, %v975
        %v1734 = vmul.f32 %v1733, %v1732
        %v1735 = vmul.f32 0.5, %v1734
        %v1736 = vsub.f32 1.5, %v1735
        %v1737 = vmul.f32 %v1732, %v1736
        %v1738 = vmul.f32 %v975, %v1737
        %vm1739 = vcmp.eq.f32.partialorder %v975, inf
        %v1740 = vsel %vm1739, %v975, %v1738
        %vm1741 = vcmp.eq.f32.partialorder %v975, 0.0
        %v1742 = vand.u32 %v975, 2147483648
        %v1743 = vsel %vm1741, %v1742, %v1740
        %s1744 = sld [smem:[#allocation2]]
        %v1745 = vadd.f32 %v987, 1e-06
        %v1746 = vadd.f32 %v999, 1e-06
        %v1747 = vadd.f32 %v1011, 1e-06
        %v1748 = vadd.f32 %v1023, 1e-06
        %v1749 = vadd.f32 %v1035, 1e-06
        %v1750 = vadd.f32 %v1047, 1e-06
        %v1751 = vadd.f32 %v1059, 1e-06
        %v1752 = vadd.f32 %v1071, 1e-06
        %v1753 = vadd.f32 %v1083, 1e-06
        %v1754 = vadd.f32 %v1095, 1e-06
        %v1755 = vadd.f32 %v1107, 1e-06
        %v1756 = vadd.f32 %v1119, 1e-06
        %v1757 = vadd.f32 %v1131, 1e-06
        %v1758 = vadd.f32 %v1143, 1e-06
        %v1759 = vadd.f32 %v1155, 1e-06
        %v1760 = vadd.f32 %v1167, 1e-06
        %v1761 = vadd.f32 %v1179, 1e-06
        %v1762 = vadd.f32 %v1191, 1e-06
        %v1763 = vadd.f32 %v1203, 1e-06
        %v1764 = vadd.f32 %v1215, 1e-06
        %v1765 = vadd.f32 %v1227, 1e-06
        %v1766 = vadd.f32 %v1239, 1e-06
        %v1767 = vadd.f32 %v1251, 1e-06
        %v1768 = vadd.f32 %v1263, 1e-06
        %v1769 = vadd.f32 %v1275, 1e-06
        %v1770 = vadd.f32 %v1287, 1e-06
        %v1771 = vadd.f32 %v1299, 1e-06
        %v1772 = vadd.f32 %v1311, 1e-06
        %v1773 = vadd.f32 %v1323, 1e-06
        %v1774 = vadd.f32 %v1335, 1e-06
        %v1775 = vadd.f32 %v1347, 1e-06
        %v1776 = vadd.f32 %v1359, 1e-06
        %v1777 = vadd.f32 %v1371, 1e-06
        %v1778 = vadd.f32 %v1383, 1e-06
        %v1779 = vadd.f32 %v1395, 1e-06
        %v1780 = vadd.f32 %v1407, 1e-06
        %v1781 = vadd.f32 %v1419, 1e-06
        %v1782 = vadd.f32 %v1431, 1e-06
        %v1783 = vadd.f32 %v1443, 1e-06
        %v1784 = vadd.f32 %v1455, 1e-06
        %v1785 = vadd.f32 %v1467, 1e-06
        %v1786 = vadd.f32 %v1479, 1e-06
        %v1787 = vadd.f32 %v1491, 1e-06
        %v1788 = vadd.f32 %v1503, 1e-06
        %v1789 = vadd.f32 %v1515, 1e-06
        %v1790 = vadd.f32 %v1527, 1e-06
        %v1791 = vadd.f32 %v1539, 1e-06
        %v1792 = vadd.f32 %v1551, 1e-06
        %v1793 = vadd.f32 %v1563, 1e-06
        %v1794 = vadd.f32 %v1575, 1e-06
        %v1795 = vadd.f32 %v1587, 1e-06
        %v1796 = vadd.f32 %v1599, 1e-06
        %v1797 = vadd.f32 %v1611, 1e-06
        %v1798 = vadd.f32 %v1623, 1e-06
        %v1799 = vadd.f32 %v1635, 1e-06
        %v1800 = vadd.f32 %v1647, 1e-06
        %v1801 = vadd.f32 %v1659, 1e-06
        %v1802 = vadd.f32 %v1671, 1e-06
        %v1803 = vadd.f32 %v1683, 1e-06
        %v1804 = vadd.f32 %v1695, 1e-06
        %v1805 = vadd.f32 %v1707, 1e-06
        %v1806 = vadd.f32 %v1719, 1e-06
        %v1807 = vadd.f32 %v1731, 1e-06
        %v1808 = vadd.f32 %v1743, 1e-06
        %v1809 = vrcp.pop %v1745
        %v1810 = vmul.f32 %v1745, %v1809
        %v1811 = vsub.f32 1.0, %v1810
        %v1812 = vmul.f32 %v1809, %v1811
        %v1813 = vadd.f32 %v1809, %v1812
        %vm1814 = vweird.f32 %v1745
        %vm1815 = vweird.f32 %v1809
        %vm1816 = vmor %vm1814, %vm1815
        %v1817 = vsel %vm1816, %v1809, %v1813
        %v1818 = vand.u32 2147483647, %v1745
        %vm1819 = vcmp.eq.f32.partialorder %v1818, 8.507059e+37
        %v1820 = vand.u32 %v1745, 2147483648
        %v1821 = vor.u32 1.1754944e-38, %v1820
        %v1822 = vsel %vm1819, %v1821, %v1817
        %v1823 = vmul.f32 %v656, %v1822
        %v1824 = vrcp.pop %v1746
        %v1825 = vmul.f32 %v1746, %v1824
        %v1826 = vsub.f32 1.0, %v1825
        %v1827 = vmul.f32 %v1824, %v1826
        %v1828 = vadd.f32 %v1824, %v1827
        %vm1829 = vweird.f32 %v1746
        %vm1830 = vweird.f32 %v1824
        %vm1831 = vmor %vm1829, %vm1830
        %v1832 = vsel %vm1831, %v1824, %v1828
        %v1833 = vand.u32 2147483647, %v1746
        %vm1834 = vcmp.eq.f32.partialorder %v1833, 8.507059e+37
        %v1835 = vand.u32 %v1746, 2147483648
        %v1836 = vor.u32 1.1754944e-38, %v1835
        %v1837 = vsel %vm1834, %v1836, %v1832
        %v1838 = vmul.f32 %v657, %v1837
        %v1839 = vrcp.pop %v1747
        %v1840 = vmul.f32 %v1747, %v1839
        %v1841 = vsub.f32 1.0, %v1840
        %v1842 = vmul.f32 %v1839, %v1841
        %v1843 = vadd.f32 %v1839, %v1842
        %vm1844 = vweird.f32 %v1747
        %vm1845 = vweird.f32 %v1839
        %vm1846 = vmor %vm1844, %vm1845
        %v1847 = vsel %vm1846, %v1839, %v1843
        %v1848 = vand.u32 2147483647, %v1747
        %vm1849 = vcmp.eq.f32.partialorder %v1848, 8.507059e+37
        %v1850 = vand.u32 %v1747, 2147483648
        %v1851 = vor.u32 1.1754944e-38, %v1850
        %v1852 = vsel %vm1849, %v1851, %v1847
        %v1853 = vmul.f32 %v658, %v1852
        %v1854 = vrcp.pop %v1748
        %v1855 = vmul.f32 %v1748, %v1854
        %v1856 = vsub.f32 1.0, %v1855
        %v1857 = vmul.f32 %v1854, %v1856
        %v1858 = vadd.f32 %v1854, %v1857
        %vm1859 = vweird.f32 %v1748
        %vm1860 = vweird.f32 %v1854
        %vm1861 = vmor %vm1859, %vm1860
        %v1862 = vsel %vm1861, %v1854, %v1858
        %v1863 = vand.u32 2147483647, %v1748
        %vm1864 = vcmp.eq.f32.partialorder %v1863, 8.507059e+37
        %v1865 = vand.u32 %v1748, 2147483648
        %v1866 = vor.u32 1.1754944e-38, %v1865
        %v1867 = vsel %vm1864, %v1866, %v1862
        %v1868 = vmul.f32 %v659, %v1867
        %v1869 = vrcp.pop %v1749
        %v1870 = vmul.f32 %v1749, %v1869
        %v1871 = vsub.f32 1.0, %v1870
        %v1872 = vmul.f32 %v1869, %v1871
        %v1873 = vadd.f32 %v1869, %v1872
        %vm1874 = vweird.f32 %v1749
        %vm1875 = vweird.f32 %v1869
        %vm1876 = vmor %vm1874, %vm1875
        %v1877 = vsel %vm1876, %v1869, %v1873
        %v1878 = vand.u32 2147483647, %v1749
        %vm1879 = vcmp.eq.f32.partialorder %v1878, 8.507059e+37
        %v1880 = vand.u32 %v1749, 2147483648
        %v1881 = vor.u32 1.1754944e-38, %v1880
        %v1882 = vsel %vm1879, %v1881, %v1877
        %v1883 = vmul.f32 %v660, %v1882
        %v1884 = vrcp.pop %v1750
        %v1885 = vmul.f32 %v1750, %v1884
        %v1886 = vsub.f32 1.0, %v1885
        %v1887 = vmul.f32 %v1884, %v1886
        %v1888 = vadd.f32 %v1884, %v1887
        %vm1889 = vweird.f32 %v1750
        %vm1890 = vweird.f32 %v1884
        %vm1891 = vmor %vm1889, %vm1890
        %v1892 = vsel %vm1891, %v1884, %v1888
        %v1893 = vand.u32 2147483647, %v1750
        %vm1894 = vcmp.eq.f32.partialorder %v1893, 8.507059e+37
        %v1895 = vand.u32 %v1750, 2147483648
        %v1896 = vor.u32 1.1754944e-38, %v1895
        %v1897 = vsel %vm1894, %v1896, %v1892
        %v1898 = vmul.f32 %v661, %v1897
        %v1899 = vrcp.pop %v1751
        %v1900 = vmul.f32 %v1751, %v1899
        %v1901 = vsub.f32 1.0, %v1900
        %v1902 = vmul.f32 %v1899, %v1901
        %v1903 = vadd.f32 %v1899, %v1902
        %vm1904 = vweird.f32 %v1751
        %vm1905 = vweird.f32 %v1899
        %vm1906 = vmor %vm1904, %vm1905
        %v1907 = vsel %vm1906, %v1899, %v1903
        %v1908 = vand.u32 2147483647, %v1751
        %vm1909 = vcmp.eq.f32.partialorder %v1908, 8.507059e+37
        %v1910 = vand.u32 %v1751, 2147483648
        %v1911 = vor.u32 1.1754944e-38, %v1910
        %v1912 = vsel %vm1909, %v1911, %v1907
        %v1913 = vmul.f32 %v662, %v1912
        %v1914 = vrcp.pop %v1752
        %v1915 = vmul.f32 %v1752, %v1914
        %v1916 = vsub.f32 1.0, %v1915
        %v1917 = vmul.f32 %v1914, %v1916
        %v1918 = vadd.f32 %v1914, %v1917
        %vm1919 = vweird.f32 %v1752
        %vm1920 = vweird.f32 %v1914
        %vm1921 = vmor %vm1919, %vm1920
        %v1922 = vsel %vm1921, %v1914, %v1918
        %v1923 = vand.u32 2147483647, %v1752
        %vm1924 = vcmp.eq.f32.partialorder %v1923, 8.507059e+37
        %v1925 = vand.u32 %v1752, 2147483648
        %v1926 = vor.u32 1.1754944e-38, %v1925
        %v1927 = vsel %vm1924, %v1926, %v1922
        %v1928 = vmul.f32 %v663, %v1927
        %v1929 = vrcp.pop %v1753
        %v1930 = vmul.f32 %v1753, %v1929
        %v1931 = vsub.f32 1.0, %v1930
        %v1932 = vmul.f32 %v1929, %v1931
        %v1933 = vadd.f32 %v1929, %v1932
        %vm1934 = vweird.f32 %v1753
        %vm1935 = vweird.f32 %v1929
        %vm1936 = vmor %vm1934, %vm1935
        %v1937 = vsel %vm1936, %v1929, %v1933
        %v1938 = vand.u32 2147483647, %v1753
        %vm1939 = vcmp.eq.f32.partialorder %v1938, 8.507059e+37
        %v1940 = vand.u32 %v1753, 2147483648
        %v1941 = vor.u32 1.1754944e-38, %v1940
        %v1942 = vsel %vm1939, %v1941, %v1937
        %v1943 = vmul.f32 %v664, %v1942
        %v1944 = vrcp.pop %v1754
        %v1945 = vmul.f32 %v1754, %v1944
        %v1946 = vsub.f32 1.0, %v1945
        %v1947 = vmul.f32 %v1944, %v1946
        %v1948 = vadd.f32 %v1944, %v1947
        %vm1949 = vweird.f32 %v1754
        %vm1950 = vweird.f32 %v1944
        %vm1951 = vmor %vm1949, %vm1950
        %v1952 = vsel %vm1951, %v1944, %v1948
        %v1953 = vand.u32 2147483647, %v1754
        %vm1954 = vcmp.eq.f32.partialorder %v1953, 8.507059e+37
        %v1955 = vand.u32 %v1754, 2147483648
        %v1956 = vor.u32 1.1754944e-38, %v1955
        %v1957 = vsel %vm1954, %v1956, %v1952
        %v1958 = vmul.f32 %v665, %v1957
        %v1959 = vrcp.pop %v1755
        %v1960 = vmul.f32 %v1755, %v1959
        %v1961 = vsub.f32 1.0, %v1960
        %v1962 = vmul.f32 %v1959, %v1961
        %v1963 = vadd.f32 %v1959, %v1962
        %vm1964 = vweird.f32 %v1755
        %vm1965 = vweird.f32 %v1959
        %vm1966 = vmor %vm1964, %vm1965
        %v1967 = vsel %vm1966, %v1959, %v1963
        %v1968 = vand.u32 2147483647, %v1755
        %vm1969 = vcmp.eq.f32.partialorder %v1968, 8.507059e+37
        %v1970 = vand.u32 %v1755, 2147483648
        %v1971 = vor.u32 1.1754944e-38, %v1970
        %v1972 = vsel %vm1969, %v1971, %v1967
        %v1973 = vmul.f32 %v666, %v1972
        %v1974 = vrcp.pop %v1756
        %v1975 = vmul.f32 %v1756, %v1974
        %v1976 = vsub.f32 1.0, %v1975
        %v1977 = vmul.f32 %v1974, %v1976
        %v1978 = vadd.f32 %v1974, %v1977
        %vm1979 = vweird.f32 %v1756
        %vm1980 = vweird.f32 %v1974
        %vm1981 = vmor %vm1979, %vm1980
        %v1982 = vsel %vm1981, %v1974, %v1978
        %v1983 = vand.u32 2147483647, %v1756
        %vm1984 = vcmp.eq.f32.partialorder %v1983, 8.507059e+37
        %v1985 = vand.u32 %v1756, 2147483648
        %v1986 = vor.u32 1.1754944e-38, %v1985
        %v1987 = vsel %vm1984, %v1986, %v1982
        %v1988 = vmul.f32 %v667, %v1987
        %v1989 = vrcp.pop %v1757
        %v1990 = vmul.f32 %v1757, %v1989
        %v1991 = vsub.f32 1.0, %v1990
        %v1992 = vmul.f32 %v1989, %v1991
        %v1993 = vadd.f32 %v1989, %v1992
        %vm1994 = vweird.f32 %v1757
        %vm1995 = vweird.f32 %v1989
        %vm1996 = vmor %vm1994, %vm1995
        %v1997 = vsel %vm1996, %v1989, %v1993
        %v1998 = vand.u32 2147483647, %v1757
        %vm1999 = vcmp.eq.f32.partialorder %v1998, 8.507059e+37
        %v2000 = vand.u32 %v1757, 2147483648
        %v2001 = vor.u32 1.1754944e-38, %v2000
        %v2002 = vsel %vm1999, %v2001, %v1997
        %v2003 = vmul.f32 %v668, %v2002
        %v2004 = vrcp.pop %v1758
        %v2005 = vmul.f32 %v1758, %v2004
        %v2006 = vsub.f32 1.0, %v2005
        %v2007 = vmul.f32 %v2004, %v2006
        %v2008 = vadd.f32 %v2004, %v2007
        %vm2009 = vweird.f32 %v1758
        %vm2010 = vweird.f32 %v2004
        %vm2011 = vmor %vm2009, %vm2010
        %v2012 = vsel %vm2011, %v2004, %v2008
        %v2013 = vand.u32 2147483647, %v1758
        %vm2014 = vcmp.eq.f32.partialorder %v2013, 8.507059e+37
        %v2015 = vand.u32 %v1758, 2147483648
        %v2016 = vor.u32 1.1754944e-38, %v2015
        %v2017 = vsel %vm2014, %v2016, %v2012
        %v2018 = vmul.f32 %v669, %v2017
        %v2019 = vrcp.pop %v1759
        %v2020 = vmul.f32 %v1759, %v2019
        %v2021 = vsub.f32 1.0, %v2020
        %v2022 = vmul.f32 %v2019, %v2021
        %v2023 = vadd.f32 %v2019, %v2022
        %vm2024 = vweird.f32 %v1759
        %vm2025 = vweird.f32 %v2019
        %vm2026 = vmor %vm2024, %vm2025
        %v2027 = vsel %vm2026, %v2019, %v2023
        %v2028 = vand.u32 2147483647, %v1759
        %vm2029 = vcmp.eq.f32.partialorder %v2028, 8.507059e+37
        %v2030 = vand.u32 %v1759, 2147483648
        %v2031 = vor.u32 1.1754944e-38, %v2030
        %v2032 = vsel %vm2029, %v2031, %v2027
        %v2033 = vmul.f32 %v670, %v2032
        %v2034 = vrcp.pop %v1760
        %v2035 = vmul.f32 %v1760, %v2034
        %v2036 = vsub.f32 1.0, %v2035
        %v2037 = vmul.f32 %v2034, %v2036
        %v2038 = vadd.f32 %v2034, %v2037
        %vm2039 = vweird.f32 %v1760
        %vm2040 = vweird.f32 %v2034
        %vm2041 = vmor %vm2039, %vm2040
        %v2042 = vsel %vm2041, %v2034, %v2038
        %v2043 = vand.u32 2147483647, %v1760
        %vm2044 = vcmp.eq.f32.partialorder %v2043, 8.507059e+37
        %v2045 = vand.u32 %v1760, 2147483648
        %v2046 = vor.u32 1.1754944e-38, %v2045
        %v2047 = vsel %vm2044, %v2046, %v2042
        %v2048 = vmul.f32 %v671, %v2047
        %v2049 = vrcp.pop %v1761
        %v2050 = vmul.f32 %v1761, %v2049
        %v2051 = vsub.f32 1.0, %v2050
        %v2052 = vmul.f32 %v2049, %v2051
        %v2053 = vadd.f32 %v2049, %v2052
        %vm2054 = vweird.f32 %v1761
        %vm2055 = vweird.f32 %v2049
        %vm2056 = vmor %vm2054, %vm2055
        %v2057 = vsel %vm2056, %v2049, %v2053
        %v2058 = vand.u32 2147483647, %v1761
        %vm2059 = vcmp.eq.f32.partialorder %v2058, 8.507059e+37
        %v2060 = vand.u32 %v1761, 2147483648
        %v2061 = vor.u32 1.1754944e-38, %v2060
        %v2062 = vsel %vm2059, %v2061, %v2057
        %v2063 = vmul.f32 %v672, %v2062
        %v2064 = vrcp.pop %v1762
        %v2065 = vmul.f32 %v1762, %v2064
        %v2066 = vsub.f32 1.0, %v2065
        %v2067 = vmul.f32 %v2064, %v2066
        %v2068 = vadd.f32 %v2064, %v2067
        %vm2069 = vweird.f32 %v1762
        %vm2070 = vweird.f32 %v2064
        %vm2071 = vmor %vm2069, %vm2070
        %v2072 = vsel %vm2071, %v2064, %v2068
        %v2073 = vand.u32 2147483647, %v1762
        %vm2074 = vcmp.eq.f32.partialorder %v2073, 8.507059e+37
        %v2075 = vand.u32 %v1762, 2147483648
        %v2076 = vor.u32 1.1754944e-38, %v2075
        %v2077 = vsel %vm2074, %v2076, %v2072
        %v2078 = vmul.f32 %v673, %v2077
        %v2079 = vrcp.pop %v1763
        %v2080 = vmul.f32 %v1763, %v2079
        %v2081 = vsub.f32 1.0, %v2080
        %v2082 = vmul.f32 %v2079, %v2081
        %v2083 = vadd.f32 %v2079, %v2082
        %vm2084 = vweird.f32 %v1763
        %vm2085 = vweird.f32 %v2079
        %vm2086 = vmor %vm2084, %vm2085
        %v2087 = vsel %vm2086, %v2079, %v2083
        %v2088 = vand.u32 2147483647, %v1763
        %vm2089 = vcmp.eq.f32.partialorder %v2088, 8.507059e+37
        %v2090 = vand.u32 %v1763, 2147483648
        %v2091 = vor.u32 1.1754944e-38, %v2090
        %v2092 = vsel %vm2089, %v2091, %v2087
        %v2093 = vmul.f32 %v674, %v2092
        %v2094 = vrcp.pop %v1764
        %v2095 = vmul.f32 %v1764, %v2094
        %v2096 = vsub.f32 1.0, %v2095
        %v2097 = vmul.f32 %v2094, %v2096
        %v2098 = vadd.f32 %v2094, %v2097
        %vm2099 = vweird.f32 %v1764
        %vm2100 = vweird.f32 %v2094
        %vm2101 = vmor %vm2099, %vm2100
        %v2102 = vsel %vm2101, %v2094, %v2098
        %v2103 = vand.u32 2147483647, %v1764
        %vm2104 = vcmp.eq.f32.partialorder %v2103, 8.507059e+37
        %v2105 = vand.u32 %v1764, 2147483648
        %v2106 = vor.u32 1.1754944e-38, %v2105
        %v2107 = vsel %vm2104, %v2106, %v2102
        %v2108 = vmul.f32 %v675, %v2107
        %v2109 = vrcp.pop %v1765
        %v2110 = vmul.f32 %v1765, %v2109
        %v2111 = vsub.f32 1.0, %v2110
        %v2112 = vmul.f32 %v2109, %v2111
        %v2113 = vadd.f32 %v2109, %v2112
        %vm2114 = vweird.f32 %v1765
        %vm2115 = vweird.f32 %v2109
        %vm2116 = vmor %vm2114, %vm2115
        %v2117 = vsel %vm2116, %v2109, %v2113
        %v2118 = vand.u32 2147483647, %v1765
        %vm2119 = vcmp.eq.f32.partialorder %v2118, 8.507059e+37
        %v2120 = vand.u32 %v1765, 2147483648
        %v2121 = vor.u32 1.1754944e-38, %v2120
        %v2122 = vsel %vm2119, %v2121, %v2117
        %v2123 = vmul.f32 %v676, %v2122
        %v2124 = vrcp.pop %v1766
        %v2125 = vmul.f32 %v1766, %v2124
        %v2126 = vsub.f32 1.0, %v2125
        %v2127 = vmul.f32 %v2124, %v2126
        %v2128 = vadd.f32 %v2124, %v2127
        %vm2129 = vweird.f32 %v1766
        %vm2130 = vweird.f32 %v2124
        %vm2131 = vmor %vm2129, %vm2130
        %v2132 = vsel %vm2131, %v2124, %v2128
        %v2133 = vand.u32 2147483647, %v1766
        %vm2134 = vcmp.eq.f32.partialorder %v2133, 8.507059e+37
        %v2135 = vand.u32 %v1766, 2147483648
        %v2136 = vor.u32 1.1754944e-38, %v2135
        %v2137 = vsel %vm2134, %v2136, %v2132
        %v2138 = vmul.f32 %v677, %v2137
        %v2139 = vrcp.pop %v1767
        %v2140 = vmul.f32 %v1767, %v2139
        %v2141 = vsub.f32 1.0, %v2140
        %v2142 = vmul.f32 %v2139, %v2141
        %v2143 = vadd.f32 %v2139, %v2142
        %vm2144 = vweird.f32 %v1767
        %vm2145 = vweird.f32 %v2139
        %vm2146 = vmor %vm2144, %vm2145
        %v2147 = vsel %vm2146, %v2139, %v2143
        %v2148 = vand.u32 2147483647, %v1767
        %vm2149 = vcmp.eq.f32.partialorder %v2148, 8.507059e+37
        %v2150 = vand.u32 %v1767, 2147483648
        %v2151 = vor.u32 1.1754944e-38, %v2150
        %v2152 = vsel %vm2149, %v2151, %v2147
        %v2153 = vmul.f32 %v678, %v2152
        %v2154 = vrcp.pop %v1768
        %v2155 = vmul.f32 %v1768, %v2154
        %v2156 = vsub.f32 1.0, %v2155
        %v2157 = vmul.f32 %v2154, %v2156
        %v2158 = vadd.f32 %v2154, %v2157
        %vm2159 = vweird.f32 %v1768
        %vm2160 = vweird.f32 %v2154
        %vm2161 = vmor %vm2159, %vm2160
        %v2162 = vsel %vm2161, %v2154, %v2158
        %v2163 = vand.u32 2147483647, %v1768
        %vm2164 = vcmp.eq.f32.partialorder %v2163, 8.507059e+37
        %v2165 = vand.u32 %v1768, 2147483648
        %v2166 = vor.u32 1.1754944e-38, %v2165
        %v2167 = vsel %vm2164, %v2166, %v2162
        %v2168 = vmul.f32 %v679, %v2167
        %v2169 = vrcp.pop %v1769
        %v2170 = vmul.f32 %v1769, %v2169
        %v2171 = vsub.f32 1.0, %v2170
        %v2172 = vmul.f32 %v2169, %v2171
        %v2173 = vadd.f32 %v2169, %v2172
        %vm2174 = vweird.f32 %v1769
        %vm2175 = vweird.f32 %v2169
        %vm2176 = vmor %vm2174, %vm2175
        %v2177 = vsel %vm2176, %v2169, %v2173
        %v2178 = vand.u32 2147483647, %v1769
        %vm2179 = vcmp.eq.f32.partialorder %v2178, 8.507059e+37
        %v2180 = vand.u32 %v1769, 2147483648
        %v2181 = vor.u32 1.1754944e-38, %v2180
        %v2182 = vsel %vm2179, %v2181, %v2177
        %v2183 = vmul.f32 %v680, %v2182
        %v2184 = vrcp.pop %v1770
        %v2185 = vmul.f32 %v1770, %v2184
        %v2186 = vsub.f32 1.0, %v2185
        %v2187 = vmul.f32 %v2184, %v2186
        %v2188 = vadd.f32 %v2184, %v2187
        %vm2189 = vweird.f32 %v1770
        %vm2190 = vweird.f32 %v2184
        %vm2191 = vmor %vm2189, %vm2190
        %v2192 = vsel %vm2191, %v2184, %v2188
        %v2193 = vand.u32 2147483647, %v1770
        %vm2194 = vcmp.eq.f32.partialorder %v2193, 8.507059e+37
        %v2195 = vand.u32 %v1770, 2147483648
        %v2196 = vor.u32 1.1754944e-38, %v2195
        %v2197 = vsel %vm2194, %v2196, %v2192
        %v2198 = vmul.f32 %v681, %v2197
        %v2199 = vrcp.pop %v1771
        %v2200 = vmul.f32 %v1771, %v2199
        %v2201 = vsub.f32 1.0, %v2200
        %v2202 = vmul.f32 %v2199, %v2201
        %v2203 = vadd.f32 %v2199, %v2202
        %vm2204 = vweird.f32 %v1771
        %vm2205 = vweird.f32 %v2199
        %vm2206 = vmor %vm2204, %vm2205
        %v2207 = vsel %vm2206, %v2199, %v2203
        %v2208 = vand.u32 2147483647, %v1771
        %vm2209 = vcmp.eq.f32.partialorder %v2208, 8.507059e+37
        %v2210 = vand.u32 %v1771, 2147483648
        %v2211 = vor.u32 1.1754944e-38, %v2210
        %v2212 = vsel %vm2209, %v2211, %v2207
        %v2213 = vmul.f32 %v682, %v2212
        %v2214 = vrcp.pop %v1772
        %v2215 = vmul.f32 %v1772, %v2214
        %v2216 = vsub.f32 1.0, %v2215
        %v2217 = vmul.f32 %v2214, %v2216
        %v2218 = vadd.f32 %v2214, %v2217
        %vm2219 = vweird.f32 %v1772
        %vm2220 = vweird.f32 %v2214
        %vm2221 = vmor %vm2219, %vm2220
        %v2222 = vsel %vm2221, %v2214, %v2218
        %v2223 = vand.u32 2147483647, %v1772
        %vm2224 = vcmp.eq.f32.partialorder %v2223, 8.507059e+37
        %v2225 = vand.u32 %v1772, 2147483648
        %v2226 = vor.u32 1.1754944e-38, %v2225
        %v2227 = vsel %vm2224, %v2226, %v2222
        %v2228 = vmul.f32 %v683, %v2227
        %v2229 = vrcp.pop %v1773
        %v2230 = vmul.f32 %v1773, %v2229
        %v2231 = vsub.f32 1.0, %v2230
        %v2232 = vmul.f32 %v2229, %v2231
        %v2233 = vadd.f32 %v2229, %v2232
        %vm2234 = vweird.f32 %v1773
        %vm2235 = vweird.f32 %v2229
        %vm2236 = vmor %vm2234, %vm2235
        %v2237 = vsel %vm2236, %v2229, %v2233
        %v2238 = vand.u32 2147483647, %v1773
        %vm2239 = vcmp.eq.f32.partialorder %v2238, 8.507059e+37
        %v2240 = vand.u32 %v1773, 2147483648
        %v2241 = vor.u32 1.1754944e-38, %v2240
        %v2242 = vsel %vm2239, %v2241, %v2237
        %v2243 = vmul.f32 %v684, %v2242
        %v2244 = vrcp.pop %v1774
        %v2245 = vmul.f32 %v1774, %v2244
        %v2246 = vsub.f32 1.0, %v2245
        %v2247 = vmul.f32 %v2244, %v2246
        %v2248 = vadd.f32 %v2244, %v2247
        %vm2249 = vweird.f32 %v1774
        %vm2250 = vweird.f32 %v2244
        %vm2251 = vmor %vm2249, %vm2250
        %v2252 = vsel %vm2251, %v2244, %v2248
        %v2253 = vand.u32 2147483647, %v1774
        %vm2254 = vcmp.eq.f32.partialorder %v2253, 8.507059e+37
        %v2255 = vand.u32 %v1774, 2147483648
        %v2256 = vor.u32 1.1754944e-38, %v2255
        %v2257 = vsel %vm2254, %v2256, %v2252
        %v2258 = vmul.f32 %v685, %v2257
        %v2259 = vrcp.pop %v1775
        %v2260 = vmul.f32 %v1775, %v2259
        %v2261 = vsub.f32 1.0, %v2260
        %v2262 = vmul.f32 %v2259, %v2261
        %v2263 = vadd.f32 %v2259, %v2262
        %vm2264 = vweird.f32 %v1775
        %vm2265 = vweird.f32 %v2259
        %vm2266 = vmor %vm2264, %vm2265
        %v2267 = vsel %vm2266, %v2259, %v2263
        %v2268 = vand.u32 2147483647, %v1775
        %vm2269 = vcmp.eq.f32.partialorder %v2268, 8.507059e+37
        %v2270 = vand.u32 %v1775, 2147483648
        %v2271 = vor.u32 1.1754944e-38, %v2270
        %v2272 = vsel %vm2269, %v2271, %v2267
        %v2273 = vmul.f32 %v686, %v2272
        %v2274 = vrcp.pop %v1776
        %v2275 = vmul.f32 %v1776, %v2274
        %v2276 = vsub.f32 1.0, %v2275
        %v2277 = vmul.f32 %v2274, %v2276
        %v2278 = vadd.f32 %v2274, %v2277
        %vm2279 = vweird.f32 %v1776
        %vm2280 = vweird.f32 %v2274
        %vm2281 = vmor %vm2279, %vm2280
        %v2282 = vsel %vm2281, %v2274, %v2278
        %v2283 = vand.u32 2147483647, %v1776
        %vm2284 = vcmp.eq.f32.partialorder %v2283, 8.507059e+37
        %v2285 = vand.u32 %v1776, 2147483648
        %v2286 = vor.u32 1.1754944e-38, %v2285
        %v2287 = vsel %vm2284, %v2286, %v2282
        %v2288 = vmul.f32 %v687, %v2287
        %v2289 = vrcp.pop %v1777
        %v2290 = vmul.f32 %v1777, %v2289
        %v2291 = vsub.f32 1.0, %v2290
        %v2292 = vmul.f32 %v2289, %v2291
        %v2293 = vadd.f32 %v2289, %v2292
        %vm2294 = vweird.f32 %v1777
        %vm2295 = vweird.f32 %v2289
        %vm2296 = vmor %vm2294, %vm2295
        %v2297 = vsel %vm2296, %v2289, %v2293
        %v2298 = vand.u32 2147483647, %v1777
        %vm2299 = vcmp.eq.f32.partialorder %v2298, 8.507059e+37
        %v2300 = vand.u32 %v1777, 2147483648
        %v2301 = vor.u32 1.1754944e-38, %v2300
        %v2302 = vsel %vm2299, %v2301, %v2297
        %v2303 = vmul.f32 %v688, %v2302
        %v2304 = vrcp.pop %v1778
        %v2305 = vmul.f32 %v1778, %v2304
        %v2306 = vsub.f32 1.0, %v2305
        %v2307 = vmul.f32 %v2304, %v2306
        %v2308 = vadd.f32 %v2304, %v2307
        %vm2309 = vweird.f32 %v1778
        %vm2310 = vweird.f32 %v2304
        %vm2311 = vmor %vm2309, %vm2310
        %v2312 = vsel %vm2311, %v2304, %v2308
        %v2313 = vand.u32 2147483647, %v1778
        %vm2314 = vcmp.eq.f32.partialorder %v2313, 8.507059e+37
        %v2315 = vand.u32 %v1778, 2147483648
        %v2316 = vor.u32 1.1754944e-38, %v2315
        %v2317 = vsel %vm2314, %v2316, %v2312
        %v2318 = vmul.f32 %v689, %v2317
        %v2319 = vrcp.pop %v1779
        %v2320 = vmul.f32 %v1779, %v2319
        %v2321 = vsub.f32 1.0, %v2320
        %v2322 = vmul.f32 %v2319, %v2321
        %v2323 = vadd.f32 %v2319, %v2322
        %vm2324 = vweird.f32 %v1779
        %vm2325 = vweird.f32 %v2319
        %vm2326 = vmor %vm2324, %vm2325
        %v2327 = vsel %vm2326, %v2319, %v2323
        %v2328 = vand.u32 2147483647, %v1779
        %vm2329 = vcmp.eq.f32.partialorder %v2328, 8.507059e+37
        %v2330 = vand.u32 %v1779, 2147483648
        %v2331 = vor.u32 1.1754944e-38, %v2330
        %v2332 = vsel %vm2329, %v2331, %v2327
        %v2333 = vmul.f32 %v690, %v2332
        %v2334 = vrcp.pop %v1780
        %v2335 = vmul.f32 %v1780, %v2334
        %v2336 = vsub.f32 1.0, %v2335
        %v2337 = vmul.f32 %v2334, %v2336
        %v2338 = vadd.f32 %v2334, %v2337
        %vm2339 = vweird.f32 %v1780
        %vm2340 = vweird.f32 %v2334
        %vm2341 = vmor %vm2339, %vm2340
        %v2342 = vsel %vm2341, %v2334, %v2338
        %v2343 = vand.u32 2147483647, %v1780
        %vm2344 = vcmp.eq.f32.partialorder %v2343, 8.507059e+37
        %v2345 = vand.u32 %v1780, 2147483648
        %v2346 = vor.u32 1.1754944e-38, %v2345
        %v2347 = vsel %vm2344, %v2346, %v2342
        %v2348 = vmul.f32 %v691, %v2347
        %v2349 = vrcp.pop %v1781
        %v2350 = vmul.f32 %v1781, %v2349
        %v2351 = vsub.f32 1.0, %v2350
        %v2352 = vmul.f32 %v2349, %v2351
        %v2353 = vadd.f32 %v2349, %v2352
        %vm2354 = vweird.f32 %v1781
        %vm2355 = vweird.f32 %v2349
        %vm2356 = vmor %vm2354, %vm2355
        %v2357 = vsel %vm2356, %v2349, %v2353
        %v2358 = vand.u32 2147483647, %v1781
        %vm2359 = vcmp.eq.f32.partialorder %v2358, 8.507059e+37
        %v2360 = vand.u32 %v1781, 2147483648
        %v2361 = vor.u32 1.1754944e-38, %v2360
        %v2362 = vsel %vm2359, %v2361, %v2357
        %v2363 = vmul.f32 %v692, %v2362
        %v2364 = vrcp.pop %v1782
        %v2365 = vmul.f32 %v1782, %v2364
        %v2366 = vsub.f32 1.0, %v2365
        %v2367 = vmul.f32 %v2364, %v2366
        %v2368 = vadd.f32 %v2364, %v2367
        %vm2369 = vweird.f32 %v1782
        %vm2370 = vweird.f32 %v2364
        %vm2371 = vmor %vm2369, %vm2370
        %v2372 = vsel %vm2371, %v2364, %v2368
        %v2373 = vand.u32 2147483647, %v1782
        %vm2374 = vcmp.eq.f32.partialorder %v2373, 8.507059e+37
        %v2375 = vand.u32 %v1782, 2147483648
        %v2376 = vor.u32 1.1754944e-38, %v2375
        %v2377 = vsel %vm2374, %v2376, %v2372
        %v2378 = vmul.f32 %v693, %v2377
        %v2379 = vrcp.pop %v1783
        %v2380 = vmul.f32 %v1783, %v2379
        %v2381 = vsub.f32 1.0, %v2380
        %v2382 = vmul.f32 %v2379, %v2381
        %v2383 = vadd.f32 %v2379, %v2382
        %vm2384 = vweird.f32 %v1783
        %vm2385 = vweird.f32 %v2379
        %vm2386 = vmor %vm2384, %vm2385
        %v2387 = vsel %vm2386, %v2379, %v2383
        %v2388 = vand.u32 2147483647, %v1783
        %vm2389 = vcmp.eq.f32.partialorder %v2388, 8.507059e+37
        %v2390 = vand.u32 %v1783, 2147483648
        %v2391 = vor.u32 1.1754944e-38, %v2390
        %v2392 = vsel %vm2389, %v2391, %v2387
        %v2393 = vmul.f32 %v694, %v2392
        %v2394 = vrcp.pop %v1784
        %v2395 = vmul.f32 %v1784, %v2394
        %v2396 = vsub.f32 1.0, %v2395
        %v2397 = vmul.f32 %v2394, %v2396
        %v2398 = vadd.f32 %v2394, %v2397
        %vm2399 = vweird.f32 %v1784
        %vm2400 = vweird.f32 %v2394
        %vm2401 = vmor %vm2399, %vm2400
        %v2402 = vsel %vm2401, %v2394, %v2398
        %v2403 = vand.u32 2147483647, %v1784
        %vm2404 = vcmp.eq.f32.partialorder %v2403, 8.507059e+37
        %v2405 = vand.u32 %v1784, 2147483648
        %v2406 = vor.u32 1.1754944e-38, %v2405
        %v2407 = vsel %vm2404, %v2406, %v2402
        %v2408 = vmul.f32 %v695, %v2407
        %v2409 = vrcp.pop %v1785
        %v2410 = vmul.f32 %v1785, %v2409
        %v2411 = vsub.f32 1.0, %v2410
        %v2412 = vmul.f32 %v2409, %v2411
        %v2413 = vadd.f32 %v2409, %v2412
        %vm2414 = vweird.f32 %v1785
        %vm2415 = vweird.f32 %v2409
        %vm2416 = vmor %vm2414, %vm2415
        %v2417 = vsel %vm2416, %v2409, %v2413
        %v2418 = vand.u32 2147483647, %v1785
        %vm2419 = vcmp.eq.f32.partialorder %v2418, 8.507059e+37
        %v2420 = vand.u32 %v1785, 2147483648
        %v2421 = vor.u32 1.1754944e-38, %v2420
        %v2422 = vsel %vm2419, %v2421, %v2417
        %v2423 = vmul.f32 %v696, %v2422
        %v2424 = vrcp.pop %v1786
        %v2425 = vmul.f32 %v1786, %v2424
        %v2426 = vsub.f32 1.0, %v2425
        %v2427 = vmul.f32 %v2424, %v2426
        %v2428 = vadd.f32 %v2424, %v2427
        %vm2429 = vweird.f32 %v1786
        %vm2430 = vweird.f32 %v2424
        %vm2431 = vmor %vm2429, %vm2430
        %v2432 = vsel %vm2431, %v2424, %v2428
        %v2433 = vand.u32 2147483647, %v1786
        %vm2434 = vcmp.eq.f32.partialorder %v2433, 8.507059e+37
        %v2435 = vand.u32 %v1786, 2147483648
        %v2436 = vor.u32 1.1754944e-38, %v2435
        %v2437 = vsel %vm2434, %v2436, %v2432
        %v2438 = vmul.f32 %v697, %v2437
        %v2439 = vrcp.pop %v1787
        %v2440 = vmul.f32 %v1787, %v2439
        %v2441 = vsub.f32 1.0, %v2440
        %v2442 = vmul.f32 %v2439, %v2441
        %v2443 = vadd.f32 %v2439, %v2442
        %vm2444 = vweird.f32 %v1787
        %vm2445 = vweird.f32 %v2439
        %vm2446 = vmor %vm2444, %vm2445
        %v2447 = vsel %vm2446, %v2439, %v2443
        %v2448 = vand.u32 2147483647, %v1787
        %vm2449 = vcmp.eq.f32.partialorder %v2448, 8.507059e+37
        %v2450 = vand.u32 %v1787, 2147483648
        %v2451 = vor.u32 1.1754944e-38, %v2450
        %v2452 = vsel %vm2449, %v2451, %v2447
        %v2453 = vmul.f32 %v698, %v2452
        %v2454 = vrcp.pop %v1788
        %v2455 = vmul.f32 %v1788, %v2454
        %v2456 = vsub.f32 1.0, %v2455
        %v2457 = vmul.f32 %v2454, %v2456
        %v2458 = vadd.f32 %v2454, %v2457
        %vm2459 = vweird.f32 %v1788
        %vm2460 = vweird.f32 %v2454
        %vm2461 = vmor %vm2459, %vm2460
        %v2462 = vsel %vm2461, %v2454, %v2458
        %v2463 = vand.u32 2147483647, %v1788
        %vm2464 = vcmp.eq.f32.partialorder %v2463, 8.507059e+37
        %v2465 = vand.u32 %v1788, 2147483648
        %v2466 = vor.u32 1.1754944e-38, %v2465
        %v2467 = vsel %vm2464, %v2466, %v2462
        %v2468 = vmul.f32 %v699, %v2467
        %v2469 = vrcp.pop %v1789
        %v2470 = vmul.f32 %v1789, %v2469
        %v2471 = vsub.f32 1.0, %v2470
        %v2472 = vmul.f32 %v2469, %v2471
        %v2473 = vadd.f32 %v2469, %v2472
        %vm2474 = vweird.f32 %v1789
        %vm2475 = vweird.f32 %v2469
        %vm2476 = vmor %vm2474, %vm2475
        %v2477 = vsel %vm2476, %v2469, %v2473
        %v2478 = vand.u32 2147483647, %v1789
        %vm2479 = vcmp.eq.f32.partialorder %v2478, 8.507059e+37
        %v2480 = vand.u32 %v1789, 2147483648
        %v2481 = vor.u32 1.1754944e-38, %v2480
        %v2482 = vsel %vm2479, %v2481, %v2477
        %v2483 = vmul.f32 %v700, %v2482
        %v2484 = vrcp.pop %v1790
        %v2485 = vmul.f32 %v1790, %v2484
        %v2486 = vsub.f32 1.0, %v2485
        %v2487 = vmul.f32 %v2484, %v2486
        %v2488 = vadd.f32 %v2484, %v2487
        %vm2489 = vweird.f32 %v1790
        %vm2490 = vweird.f32 %v2484
        %vm2491 = vmor %vm2489, %vm2490
        %v2492 = vsel %vm2491, %v2484, %v2488
        %v2493 = vand.u32 2147483647, %v1790
        %vm2494 = vcmp.eq.f32.partialorder %v2493, 8.507059e+37
        %v2495 = vand.u32 %v1790, 2147483648
        %v2496 = vor.u32 1.1754944e-38, %v2495
        %v2497 = vsel %vm2494, %v2496, %v2492
        %v2498 = vmul.f32 %v701, %v2497
        %v2499 = vrcp.pop %v1791
        %v2500 = vmul.f32 %v1791, %v2499
        %v2501 = vsub.f32 1.0, %v2500
        %v2502 = vmul.f32 %v2499, %v2501
        %v2503 = vadd.f32 %v2499, %v2502
        %vm2504 = vweird.f32 %v1791
        %vm2505 = vweird.f32 %v2499
        %vm2506 = vmor %vm2504, %vm2505
        %v2507 = vsel %vm2506, %v2499, %v2503
        %v2508 = vand.u32 2147483647, %v1791
        %vm2509 = vcmp.eq.f32.partialorder %v2508, 8.507059e+37
        %v2510 = vand.u32 %v1791, 2147483648
        %v2511 = vor.u32 1.1754944e-38, %v2510
        %v2512 = vsel %vm2509, %v2511, %v2507
        %v2513 = vmul.f32 %v702, %v2512
        %v2514 = vrcp.pop %v1792
        %v2515 = vmul.f32 %v1792, %v2514
        %v2516 = vsub.f32 1.0, %v2515
        %v2517 = vmul.f32 %v2514, %v2516
        %v2518 = vadd.f32 %v2514, %v2517
        %vm2519 = vweird.f32 %v1792
        %vm2520 = vweird.f32 %v2514
        %vm2521 = vmor %vm2519, %vm2520
        %v2522 = vsel %vm2521, %v2514, %v2518
        %v2523 = vand.u32 2147483647, %v1792
        %vm2524 = vcmp.eq.f32.partialorder %v2523, 8.507059e+37
        %v2525 = vand.u32 %v1792, 2147483648
        %v2526 = vor.u32 1.1754944e-38, %v2525
        %v2527 = vsel %vm2524, %v2526, %v2522
        %v2528 = vmul.f32 %v703, %v2527
        %v2529 = vrcp.pop %v1793
        %v2530 = vmul.f32 %v1793, %v2529
        %v2531 = vsub.f32 1.0, %v2530
        %v2532 = vmul.f32 %v2529, %v2531
        %v2533 = vadd.f32 %v2529, %v2532
        %vm2534 = vweird.f32 %v1793
        %vm2535 = vweird.f32 %v2529
        %vm2536 = vmor %vm2534, %vm2535
        %v2537 = vsel %vm2536, %v2529, %v2533
        %v2538 = vand.u32 2147483647, %v1793
        %vm2539 = vcmp.eq.f32.partialorder %v2538, 8.507059e+37
        %v2540 = vand.u32 %v1793, 2147483648
        %v2541 = vor.u32 1.1754944e-38, %v2540
        %v2542 = vsel %vm2539, %v2541, %v2537
        %v2543 = vmul.f32 %v704, %v2542
        %v2544 = vrcp.pop %v1794
        %v2545 = vmul.f32 %v1794, %v2544
        %v2546 = vsub.f32 1.0, %v2545
        %v2547 = vmul.f32 %v2544, %v2546
        %v2548 = vadd.f32 %v2544, %v2547
        %vm2549 = vweird.f32 %v1794
        %vm2550 = vweird.f32 %v2544
        %vm2551 = vmor %vm2549, %vm2550
        %v2552 = vsel %vm2551, %v2544, %v2548
        %v2553 = vand.u32 2147483647, %v1794
        %vm2554 = vcmp.eq.f32.partialorder %v2553, 8.507059e+37
        %v2555 = vand.u32 %v1794, 2147483648
        %v2556 = vor.u32 1.1754944e-38, %v2555
        %v2557 = vsel %vm2554, %v2556, %v2552
        %v2558 = vmul.f32 %v705, %v2557
        %v2559 = vrcp.pop %v1795
        %v2560 = vmul.f32 %v1795, %v2559
        %v2561 = vsub.f32 1.0, %v2560
        %v2562 = vmul.f32 %v2559, %v2561
        %v2563 = vadd.f32 %v2559, %v2562
        %vm2564 = vweird.f32 %v1795
        %vm2565 = vweird.f32 %v2559
        %vm2566 = vmor %vm2564, %vm2565
        %v2567 = vsel %vm2566, %v2559, %v2563
        %v2568 = vand.u32 2147483647, %v1795
        %vm2569 = vcmp.eq.f32.partialorder %v2568, 8.507059e+37
        %v2570 = vand.u32 %v1795, 2147483648
        %v2571 = vor.u32 1.1754944e-38, %v2570
        %v2572 = vsel %vm2569, %v2571, %v2567
        %v2573 = vmul.f32 %v706, %v2572
        %v2574 = vrcp.pop %v1796
        %v2575 = vmul.f32 %v1796, %v2574
        %v2576 = vsub.f32 1.0, %v2575
        %v2577 = vmul.f32 %v2574, %v2576
        %v2578 = vadd.f32 %v2574, %v2577
        %vm2579 = vweird.f32 %v1796
        %vm2580 = vweird.f32 %v2574
        %vm2581 = vmor %vm2579, %vm2580
        %v2582 = vsel %vm2581, %v2574, %v2578
        %v2583 = vand.u32 2147483647, %v1796
        %vm2584 = vcmp.eq.f32.partialorder %v2583, 8.507059e+37
        %v2585 = vand.u32 %v1796, 2147483648
        %v2586 = vor.u32 1.1754944e-38, %v2585
        %v2587 = vsel %vm2584, %v2586, %v2582
        %v2588 = vmul.f32 %v707, %v2587
        %v2589 = vrcp.pop %v1797
        %v2590 = vmul.f32 %v1797, %v2589
        %v2591 = vsub.f32 1.0, %v2590
        %v2592 = vmul.f32 %v2589, %v2591
        %v2593 = vadd.f32 %v2589, %v2592
        %vm2594 = vweird.f32 %v1797
        %vm2595 = vweird.f32 %v2589
        %vm2596 = vmor %vm2594, %vm2595
        %v2597 = vsel %vm2596, %v2589, %v2593
        %v2598 = vand.u32 2147483647, %v1797
        %vm2599 = vcmp.eq.f32.partialorder %v2598, 8.507059e+37
        %v2600 = vand.u32 %v1797, 2147483648
        %v2601 = vor.u32 1.1754944e-38, %v2600
        %v2602 = vsel %vm2599, %v2601, %v2597
        %v2603 = vmul.f32 %v708, %v2602
        %v2604 = vrcp.pop %v1798
        %v2605 = vmul.f32 %v1798, %v2604
        %v2606 = vsub.f32 1.0, %v2605
        %v2607 = vmul.f32 %v2604, %v2606
        %v2608 = vadd.f32 %v2604, %v2607
        %vm2609 = vweird.f32 %v1798
        %vm2610 = vweird.f32 %v2604
        %vm2611 = vmor %vm2609, %vm2610
        %v2612 = vsel %vm2611, %v2604, %v2608
        %v2613 = vand.u32 2147483647, %v1798
        %vm2614 = vcmp.eq.f32.partialorder %v2613, 8.507059e+37
        %v2615 = vand.u32 %v1798, 2147483648
        %v2616 = vor.u32 1.1754944e-38, %v2615
        %v2617 = vsel %vm2614, %v2616, %v2612
        %v2618 = vmul.f32 %v709, %v2617
        %v2619 = vrcp.pop %v1799
        %v2620 = vmul.f32 %v1799, %v2619
        %v2621 = vsub.f32 1.0, %v2620
        %v2622 = vmul.f32 %v2619, %v2621
        %v2623 = vadd.f32 %v2619, %v2622
        %vm2624 = vweird.f32 %v1799
        %vm2625 = vweird.f32 %v2619
        %vm2626 = vmor %vm2624, %vm2625
        %v2627 = vsel %vm2626, %v2619, %v2623
        %v2628 = vand.u32 2147483647, %v1799
        %vm2629 = vcmp.eq.f32.partialorder %v2628, 8.507059e+37
        %v2630 = vand.u32 %v1799, 2147483648
        %v2631 = vor.u32 1.1754944e-38, %v2630
        %v2632 = vsel %vm2629, %v2631, %v2627
        %v2633 = vmul.f32 %v710, %v2632
        %v2634 = vrcp.pop %v1800
        %v2635 = vmul.f32 %v1800, %v2634
        %v2636 = vsub.f32 1.0, %v2635
        %v2637 = vmul.f32 %v2634, %v2636
        %v2638 = vadd.f32 %v2634, %v2637
        %vm2639 = vweird.f32 %v1800
        %vm2640 = vweird.f32 %v2634
        %vm2641 = vmor %vm2639, %vm2640
        %v2642 = vsel %vm2641, %v2634, %v2638
        %v2643 = vand.u32 2147483647, %v1800
        %vm2644 = vcmp.eq.f32.partialorder %v2643, 8.507059e+37
        %v2645 = vand.u32 %v1800, 2147483648
        %v2646 = vor.u32 1.1754944e-38, %v2645
        %v2647 = vsel %vm2644, %v2646, %v2642
        %v2648 = vmul.f32 %v711, %v2647
        %v2649 = vrcp.pop %v1801
        %v2650 = vmul.f32 %v1801, %v2649
        %v2651 = vsub.f32 1.0, %v2650
        %v2652 = vmul.f32 %v2649, %v2651
        %v2653 = vadd.f32 %v2649, %v2652
        %vm2654 = vweird.f32 %v1801
        %vm2655 = vweird.f32 %v2649
        %vm2656 = vmor %vm2654, %vm2655
        %v2657 = vsel %vm2656, %v2649, %v2653
        %v2658 = vand.u32 2147483647, %v1801
        %vm2659 = vcmp.eq.f32.partialorder %v2658, 8.507059e+37
        %v2660 = vand.u32 %v1801, 2147483648
        %v2661 = vor.u32 1.1754944e-38, %v2660
        %v2662 = vsel %vm2659, %v2661, %v2657
        %v2663 = vmul.f32 %v712, %v2662
        %v2664 = vrcp.pop %v1802
        %v2665 = vmul.f32 %v1802, %v2664
        %v2666 = vsub.f32 1.0, %v2665
        %v2667 = vmul.f32 %v2664, %v2666
        %v2668 = vadd.f32 %v2664, %v2667
        %vm2669 = vweird.f32 %v1802
        %vm2670 = vweird.f32 %v2664
        %vm2671 = vmor %vm2669, %vm2670
        %v2672 = vsel %vm2671, %v2664, %v2668
        %v2673 = vand.u32 2147483647, %v1802
        %vm2674 = vcmp.eq.f32.partialorder %v2673, 8.507059e+37
        %v2675 = vand.u32 %v1802, 2147483648
        %v2676 = vor.u32 1.1754944e-38, %v2675
        %v2677 = vsel %vm2674, %v2676, %v2672
        %v2678 = vmul.f32 %v713, %v2677
        %v2679 = vrcp.pop %v1803
        %v2680 = vmul.f32 %v1803, %v2679
        %v2681 = vsub.f32 1.0, %v2680
        %v2682 = vmul.f32 %v2679, %v2681
        %v2683 = vadd.f32 %v2679, %v2682
        %vm2684 = vweird.f32 %v1803
        %vm2685 = vweird.f32 %v2679
        %vm2686 = vmor %vm2684, %vm2685
        %v2687 = vsel %vm2686, %v2679, %v2683
        %v2688 = vand.u32 2147483647, %v1803
        %vm2689 = vcmp.eq.f32.partialorder %v2688, 8.507059e+37
        %v2690 = vand.u32 %v1803, 2147483648
        %v2691 = vor.u32 1.1754944e-38, %v2690
        %v2692 = vsel %vm2689, %v2691, %v2687
        %v2693 = vmul.f32 %v714, %v2692
        %v2694 = vrcp.pop %v1804
        %v2695 = vmul.f32 %v1804, %v2694
        %v2696 = vsub.f32 1.0, %v2695
        %v2697 = vmul.f32 %v2694, %v2696
        %v2698 = vadd.f32 %v2694, %v2697
        %vm2699 = vweird.f32 %v1804
        %vm2700 = vweird.f32 %v2694
        %vm2701 = vmor %vm2699, %vm2700
        %v2702 = vsel %vm2701, %v2694, %v2698
        %v2703 = vand.u32 2147483647, %v1804
        %vm2704 = vcmp.eq.f32.partialorder %v2703, 8.507059e+37
        %v2705 = vand.u32 %v1804, 2147483648
        %v2706 = vor.u32 1.1754944e-38, %v2705
        %v2707 = vsel %vm2704, %v2706, %v2702
        %v2708 = vmul.f32 %v715, %v2707
        %v2709 = vrcp.pop %v1805
        %v2710 = vmul.f32 %v1805, %v2709
        %v2711 = vsub.f32 1.0, %v2710
        %v2712 = vmul.f32 %v2709, %v2711
        %v2713 = vadd.f32 %v2709, %v2712
        %vm2714 = vweird.f32 %v1805
        %vm2715 = vweird.f32 %v2709
        %vm2716 = vmor %vm2714, %vm2715
        %v2717 = vsel %vm2716, %v2709, %v2713
        %v2718 = vand.u32 2147483647, %v1805
        %vm2719 = vcmp.eq.f32.partialorder %v2718, 8.507059e+37
        %v2720 = vand.u32 %v1805, 2147483648
        %v2721 = vor.u32 1.1754944e-38, %v2720
        %v2722 = vsel %vm2719, %v2721, %v2717
        %v2723 = vmul.f32 %v716, %v2722
        %v2724 = vrcp.pop %v1806
        %v2725 = vmul.f32 %v1806, %v2724
        %v2726 = vsub.f32 1.0, %v2725
        %v2727 = vmul.f32 %v2724, %v2726
        %v2728 = vadd.f32 %v2724, %v2727
        %vm2729 = vweird.f32 %v1806
        %vm2730 = vweird.f32 %v2724
        %vm2731 = vmor %vm2729, %vm2730
        %v2732 = vsel %vm2731, %v2724, %v2728
        %v2733 = vand.u32 2147483647, %v1806
        %vm2734 = vcmp.eq.f32.partialorder %v2733, 8.507059e+37
        %v2735 = vand.u32 %v1806, 2147483648
        %v2736 = vor.u32 1.1754944e-38, %v2735
        %v2737 = vsel %vm2734, %v2736, %v2732
        %v2738 = vmul.f32 %v717, %v2737
        %v2739 = vrcp.pop %v1807
        %v2740 = vmul.f32 %v1807, %v2739
        %v2741 = vsub.f32 1.0, %v2740
        %v2742 = vmul.f32 %v2739, %v2741
        %v2743 = vadd.f32 %v2739, %v2742
        %vm2744 = vweird.f32 %v1807
        %vm2745 = vweird.f32 %v2739
        %vm2746 = vmor %vm2744, %vm2745
        %v2747 = vsel %vm2746, %v2739, %v2743
        %v2748 = vand.u32 2147483647, %v1807
        %vm2749 = vcmp.eq.f32.partialorder %v2748, 8.507059e+37
        %v2750 = vand.u32 %v1807, 2147483648
        %v2751 = vor.u32 1.1754944e-38, %v2750
        %v2752 = vsel %vm2749, %v2751, %v2747
        %v2753 = vmul.f32 %v718, %v2752
        %v2754 = vrcp.pop %v1808
        %v2755 = vmul.f32 %v1808, %v2754
        %v2756 = vsub.f32 1.0, %v2755
        %v2757 = vmul.f32 %v2754, %v2756
        %v2758 = vadd.f32 %v2754, %v2757
        %vm2759 = vweird.f32 %v1808
        %vm2760 = vweird.f32 %v2754
        %vm2761 = vmor %vm2759, %vm2760
        %v2762 = vsel %vm2761, %v2754, %v2758
        %v2763 = vand.u32 2147483647, %v1808
        %vm2764 = vcmp.eq.f32.partialorder %v2763, 8.507059e+37
        %v2765 = vand.u32 %v1808, 2147483648
        %v2766 = vor.u32 1.1754944e-38, %v2765
        %v2767 = vsel %vm2764, %v2766, %v2762
        %v2768 = vmul.f32 %v719, %v2767
        %v2769 = vstv %s1744
        %v2770 = vmul.f32 %v2769, %v1823
        %v2771 = vmul.f32 %v2769, %v1838
        %v2772 = vmul.f32 %v2769, %v1853
        %v2773 = vmul.f32 %v2769, %v1868
        %v2774 = vmul.f32 %v2769, %v1883
        %v2775 = vmul.f32 %v2769, %v1898
        %v2776 = vmul.f32 %v2769, %v1913
        %v2777 = vmul.f32 %v2769, %v1928
        %v2778 = vmul.f32 %v2769, %v1943
        %v2779 = vmul.f32 %v2769, %v1958
        %v2780 = vmul.f32 %v2769, %v1973
        %v2781 = vmul.f32 %v2769, %v1988
        %v2782 = vmul.f32 %v2769, %v2003
        %v2783 = vmul.f32 %v2769, %v2018
        %v2784 = vmul.f32 %v2769, %v2033
        %v2785 = vmul.f32 %v2769, %v2048
        %v2786 = vmul.f32 %v2769, %v2063
        %v2787 = vmul.f32 %v2769, %v2078
        %v2788 = vmul.f32 %v2769, %v2093
        %v2789 = vmul.f32 %v2769, %v2108
        %v2790 = vmul.f32 %v2769, %v2123
        %v2791 = vmul.f32 %v2769, %v2138
        %v2792 = vmul.f32 %v2769, %v2153
        %v2793 = vmul.f32 %v2769, %v2168
        %v2794 = vmul.f32 %v2769, %v2183
        %v2795 = vmul.f32 %v2769, %v2198
        %v2796 = vmul.f32 %v2769, %v2213
        %v2797 = vmul.f32 %v2769, %v2228
        %v2798 = vmul.f32 %v2769, %v2243
        %v2799 = vmul.f32 %v2769, %v2258
        %v2800 = vmul.f32 %v2769, %v2273
        %v2801 = vmul.f32 %v2769, %v2288
        %v2802 = vmul.f32 %v2769, %v2303
        %v2803 = vmul.f32 %v2769, %v2318
        %v2804 = vmul.f32 %v2769, %v2333
        %v2805 = vmul.f32 %v2769, %v2348
        %v2806 = vmul.f32 %v2769, %v2363
        %v2807 = vmul.f32 %v2769, %v2378
        %v2808 = vmul.f32 %v2769, %v2393
        %v2809 = vmul.f32 %v2769, %v2408
        %v2810 = vmul.f32 %v2769, %v2423
        %v2811 = vmul.f32 %v2769, %v2438
        %v2812 = vmul.f32 %v2769, %v2453
        %v2813 = vmul.f32 %v2769, %v2468
        %v2814 = vmul.f32 %v2769, %v2483
        %v2815 = vmul.f32 %v2769, %v2498
        %v2816 = vmul.f32 %v2769, %v2513
        %v2817 = vmul.f32 %v2769, %v2528
        %v2818 = vmul.f32 %v2769, %v2543
        %v2819 = vmul.f32 %v2769, %v2558
        %v2820 = vmul.f32 %v2769, %v2573
        %v2821 = vmul.f32 %v2769, %v2588
        %v2822 = vmul.f32 %v2769, %v2603
        %v2823 = vmul.f32 %v2769, %v2618
        %v2824 = vmul.f32 %v2769, %v2633
        %v2825 = vmul.f32 %v2769, %v2648
        %v2826 = vmul.f32 %v2769, %v2663
        %v2827 = vmul.f32 %v2769, %v2678
        %v2828 = vmul.f32 %v2769, %v2693
        %v2829 = vmul.f32 %v2769, %v2708
        %v2830 = vmul.f32 %v2769, %v2723
        %v2831 = vmul.f32 %v2769, %v2738
        %v2832 = vmul.f32 %v2769, %v2753
        %v2833 = vmul.f32 %v2769, %v2768
        %s2834 = sld [smem:[#allocation3]]
        %v2835 = vstv %s2834
        %v2836 = vadd.f32 %v2770, %v2835
        %v2837 = vadd.f32 %v2771, %v2835
        %v2838 = vadd.f32 %v2772, %v2835
        %v2839 = vadd.f32 %v2773, %v2835
        %v2840 = vadd.f32 %v2774, %v2835
        %v2841 = vadd.f32 %v2775, %v2835
        %v2842 = vadd.f32 %v2776, %v2835
        %v2843 = vadd.f32 %v2777, %v2835
        %v2844 = vadd.f32 %v2778, %v2835
        %v2845 = vadd.f32 %v2779, %v2835
        %v2846 = vadd.f32 %v2780, %v2835
        %v2847 = vadd.f32 %v2781, %v2835
        %v2848 = vadd.f32 %v2782, %v2835
        %v2849 = vadd.f32 %v2783, %v2835
        %v2850 = vadd.f32 %v2784, %v2835
        %v2851 = vadd.f32 %v2785, %v2835
        %v2852 = vadd.f32 %v2786, %v2835
        %v2853 = vadd.f32 %v2787, %v2835
        %v2854 = vadd.f32 %v2788, %v2835
        %v2855 = vadd.f32 %v2789, %v2835
        %v2856 = vadd.f32 %v2790, %v2835
        %v2857 = vadd.f32 %v2791, %v2835
        %v2858 = vadd.f32 %v2792, %v2835
        %v2859 = vadd.f32 %v2793, %v2835
        %v2860 = vadd.f32 %v2794, %v2835
        %v2861 = vadd.f32 %v2795, %v2835
        %v2862 = vadd.f32 %v2796, %v2835
        %v2863 = vadd.f32 %v2797, %v2835
        %v2864 = vadd.f32 %v2798, %v2835
        %v2865 = vadd.f32 %v2799, %v2835
        %v2866 = vadd.f32 %v2800, %v2835
        %v2867 = vadd.f32 %v2801, %v2835
        %v2868 = vadd.f32 %v2802, %v2835
        %v2869 = vadd.f32 %v2803, %v2835
        %v2870 = vadd.f32 %v2804, %v2835
        %v2871 = vadd.f32 %v2805, %v2835
        %v2872 = vadd.f32 %v2806, %v2835
        %v2873 = vadd.f32 %v2807, %v2835
        %v2874 = vadd.f32 %v2808, %v2835
        %v2875 = vadd.f32 %v2809, %v2835
        %v2876 = vadd.f32 %v2810, %v2835
        %v2877 = vadd.f32 %v2811, %v2835
        %v2878 = vadd.f32 %v2812, %v2835
        %v2879 = vadd.f32 %v2813, %v2835
        %v2880 = vadd.f32 %v2814, %v2835
        %v2881 = vadd.f32 %v2815, %v2835
        %v2882 = vadd.f32 %v2816, %v2835
        %v2883 = vadd.f32 %v2817, %v2835
        %v2884 = vadd.f32 %v2818, %v2835
        %v2885 = vadd.f32 %v2819, %v2835
        %v2886 = vadd.f32 %v2820, %v2835
        %v2887 = vadd.f32 %v2821, %v2835
        %v2888 = vadd.f32 %v2822, %v2835
        %v2889 = vadd.f32 %v2823, %v2835
        %v2890 = vadd.f32 %v2824, %v2835
        %v2891 = vadd.f32 %v2825, %v2835
        %v2892 = vadd.f32 %v2826, %v2835
        %v2893 = vadd.f32 %v2827, %v2835
        %v2894 = vadd.f32 %v2828, %v2835
        %v2895 = vadd.f32 %v2829, %v2835
        %v2896 = vadd.f32 %v2830, %v2835
        %v2897 = vadd.f32 %v2831, %v2835
        %v2898 = vadd.f32 %v2832, %v2835
        %v2899 = vadd.f32 %v2833, %v2835
        %2900 = vst [vmem:[%s261] sm:$0xff] %v2836
        %2901 = vst [vmem:[%s261 + $0x8] sm:$0xff] %v2837
        %2902 = vst [vmem:[%s261 + $0x10] sm:$0xff] %v2838
        %2903 = vst [vmem:[%s261 + $0x18] sm:$0xff] %v2839
        %2904 = vst [vmem:[%s261 + $0x20] sm:$0xff] %v2840
        %2905 = vst [vmem:[%s261 + $0x28] sm:$0xff] %v2841
        %2906 = vst [vmem:[%s261 + $0x30] sm:$0xff] %v2842
        %2907 = vst [vmem:[%s261 + $0x38] sm:$0xff] %v2843
        %2908 = vst [vmem:[%s261 + $0x40] sm:$0xff] %v2844
        %2909 = vst [vmem:[%s261 + $0x48] sm:$0xff] %v2845
        %2910 = vst [vmem:[%s261 + $0x50] sm:$0xff] %v2846
        %2911 = vst [vmem:[%s261 + $0x58] sm:$0xff] %v2847
        %2912 = vst [vmem:[%s261 + $0x60] sm:$0xff] %v2848
        %2913 = vst [vmem:[%s261 + $0x68] sm:$0xff] %v2849
        %2914 = vst [vmem:[%s261 + $0x70] sm:$0xff] %v2850
        %2915 = vst [vmem:[%s261 + $0x78] sm:$0xff] %v2851
        %2916 = vst [vmem:[%s261 + $0x80] sm:$0xff] %v2852
        %2917 = vst [vmem:[%s261 + $0x88] sm:$0xff] %v2853
        %2918 = vst [vmem:[%s261 + $0x90] sm:$0xff] %v2854
        %2919 = vst [vmem:[%s261 + $0x98] sm:$0xff] %v2855
        %2920 = vst [vmem:[%s261 + $0xa0] sm:$0xff] %v2856
        %2921 = vst [vmem:[%s261 + $0xa8] sm:$0xff] %v2857
        %2922 = vst [vmem:[%s261 + $0xb0] sm:$0xff] %v2858
        %2923 = vst [vmem:[%s261 + $0xb8] sm:$0xff] %v2859
        %2924 = vst [vmem:[%s261 + $0xc0] sm:$0xff] %v2860
        %2925 = vst [vmem:[%s261 + $0xc8] sm:$0xff] %v2861
        %2926 = vst [vmem:[%s261 + $0xd0] sm:$0xff] %v2862
        %2927 = vst [vmem:[%s261 + $0xd8] sm:$0xff] %v2863
        %2928 = vst [vmem:[%s261 + $0xe0] sm:$0xff] %v2864
        %2929 = vst [vmem:[%s261 + $0xe8] sm:$0xff] %v2865
        %2930 = vst [vmem:[%s261 + $0xf0] sm:$0xff] %v2866
        %2931 = vst [vmem:[%s261 + $0xf8] sm:$0xff] %v2867
        %2932 = vst [vmem:[%s261 + $0x100] sm:$0xff] %v2868
        %2933 = vst [vmem:[%s261 + $0x108] sm:$0xff] %v2869
        %2934 = vst [vmem:[%s261 + $0x110] sm:$0xff] %v2870
        %2935 = vst [vmem:[%s261 + $0x118] sm:$0xff] %v2871
        %2936 = vst [vmem:[%s261 + $0x120] sm:$0xff] %v2872
        %2937 = vst [vmem:[%s261 + $0x128] sm:$0xff] %v2873
        %2938 = vst [vmem:[%s261 + $0x130] sm:$0xff] %v2874
        %2939 = vst [vmem:[%s261 + $0x138] sm:$0xff] %v2875
        %2940 = vst [vmem:[%s261 + $0x140] sm:$0xff] %v2876
        %2941 = vst [vmem:[%s261 + $0x148] sm:$0xff] %v2877
        %2942 = vst [vmem:[%s261 + $0x150] sm:$0xff] %v2878
        %2943 = vst [vmem:[%s261 + $0x158] sm:$0xff] %v2879
        %2944 = vst [vmem:[%s261 + $0x160] sm:$0xff] %v2880
        %2945 = vst [vmem:[%s261 + $0x168] sm:$0xff] %v2881
        %2946 = vst [vmem:[%s261 + $0x170] sm:$0xff] %v2882
        %2947 = vst [vmem:[%s261 + $0x178] sm:$0xff] %v2883
        %2948 = vst [vmem:[%s261 + $0x180] sm:$0xff] %v2884
        %2949 = vst [vmem:[%s261 + $0x188] sm:$0xff] %v2885
        %2950 = vst [vmem:[%s261 + $0x190] sm:$0xff] %v2886
        %2951 = vst [vmem:[%s261 + $0x198] sm:$0xff] %v2887
        %2952 = vst [vmem:[%s261 + $0x1a0] sm:$0xff] %v2888
        %2953 = vst [vmem:[%s261 + $0x1a8] sm:$0xff] %v2889
        %2954 = vst [vmem:[%s261 + $0x1b0] sm:$0xff] %v2890
        %2955 = vst [vmem:[%s261 + $0x1b8] sm:$0xff] %v2891
        %2956 = vst [vmem:[%s261 + $0x1c0] sm:$0xff] %v2892
        %2957 = vst [vmem:[%s261 + $0x1c8] sm:$0xff] %v2893
        %2958 = vst [vmem:[%s261 + $0x1d0] sm:$0xff] %v2894
        %2959 = vst [vmem:[%s261 + $0x1d8] sm:$0xff] %v2895
        %2960 = vst [vmem:[%s261 + $0x1e0] sm:$0xff] %v2896
        %2961 = vst [vmem:[%s261 + $0x1e8] sm:$0xff] %v2897
        %2962 = vst [vmem:[%s261 + $0x1f0] sm:$0xff] %v2898
        %2963 = vst [vmem:[%s261 + $0x1f8] sm:$0xff] %v2899
        %s2964 = sand.u32 %s128, 1
        %s2965 = scalar_lea.sflag [#allocation6], %s2964
        %s2966 = sand.u32 %s128, 1
        %s2967 = smul.addr %s2966, 512
        %s2968 = scalar_lea.vmem [#allocation9], %s2967
        // Predicated region
        $region45: #{tpu_custom_call.1} parent=35 // pred_check
          %p2969 = pneg %p138
        $region46: #{tpu_custom_call.1} parent=35 // pred_check_branch
          %2971 = sbr.rel (%p2969) target = $region48
        $region47: #{tpu_custom_call.1} parent=35 // pred_region
          %s2972 = smul.u32 64, %s26
          %2974 = vsyncadd %s2965, 0
          %s2975 = smul.addr %s2972, 8
          %s2976 = scalar_lea.hbm %s4, %s2975
          %s2977 = sshll.u32 %s2968, 4
          %s2978 = int_to_ptr.vmem [resolvable:$true] %s2977
          %s2979 = sshll.u32 %s2976, 4
          %s2980 = int_to_ptr.hbm [resolvable:$true] %s2979
          %2985 = dma.vmem_to_hbm [thread:$0]  %s2978, 8192, %s2980, %s2965, 128, 128, 8
        $region48: #{tpu_custom_call.1} parent=35 // pred_fallthru
          _
      $region36: #{tpu_custom_call.1} parent=5 // pred_fallthru
        _
      %p2986 = scmp.le.s32.totalorder 2, %s21
      // Predicated region
      $region49: #{tpu_custom_call.1} parent=5 // pred_check
        %p2987 = pneg %p2986
      $region50: #{tpu_custom_call.1} parent=5 // pred_check_branch
        %2989 = sbr.rel (%p2987) target = $region52
      $region51: #{tpu_custom_call.1} parent=5 // pred_region
        %s2990 = ssub.s32 %s21, 2
        // Predicated region
        $region53: #{tpu_custom_call.1} parent=51 // pred_check
          %p2991 = pneg %p144
        $region54: #{tpu_custom_call.1} parent=51 // pred_check_branch
          %2993 = sbr.rel (%p2991) target = $region56
        $region55: #{tpu_custom_call.1} parent=51 // pred_region
          %s2994 = sand.u32 %s129, 1
          %s2995 = scalar_lea.sflag [#allocation6], %s2994
          %s2996 = sand.u32 %s129, 1
          %s2997 = smul.addr %s2996, 512
          %s2998 = scalar_lea.vmem [#allocation9], %s2997
          %3000 = dma.done %s2995, 8192
        $region56: #{tpu_custom_call.1} parent=51 // pred_fallthru
          _
      $region52: #{tpu_custom_call.1} parent=5 // pred_fallthru
        _
    $region6: #{tpu_custom_call.1} parent=1 // loop_footer
      %s25 = sadd.s32 1, %s21
    $region7: #{tpu_custom_call.1} parent=1 // loop_footer_branch
      %20 = sbr.rel target = $region3
    $region8: #{tpu_custom_call.1} parent=1 // loop_exit
      _
    %3001 = vsyncpa [#allocation5], 1
    %s3002 = scalar_lea.sflag [#allocation5], 1
    %3003 = vsyncpa %s3002, 1
    %3004 = vsyncpa [#allocation8], 1
    %s3005 = scalar_lea.sflag [#allocation8], 1
    %3006 = vsyncpa %s3005, 1
    %3007 = vsyncpa [#allocation6], 1
    %s3008 = scalar_lea.sflag [#allocation6], 1
    %3009 = vsyncpa %s3008, 1

</llo_original>
